<compile_context>
chip_gen: v7x
topology: tpu7x:2x2x1
jax: 0.10.0
libtpu: 0.0.40
codegen_flags: <defaults>
</compile_context>

<pallas_src>
import functools

import jax
import jax.numpy as jnp
from jax.experimental import pallas as pl
from jax.experimental.pallas import tpu as pltpu

EPS = 1e-5


def _layernorm(x, gamma, beta):
    mu = jnp.mean(x, axis=-1, keepdims=True)
    var = jnp.mean((x - mu) ** 2, axis=-1, keepdims=True)
    return (x - mu) * jax.lax.rsqrt(var + EPS) * gamma + beta


# ----------------------------- fused Pallas kernel -------------------------

def fused_text_encoder_kernel(
        # scalar prefetch (SMEM)
        eot_ref,
        # inputs
        prompts_ref, pos_ref, mask_ref,
        ln1_g_ref, ln1_b_ref, wqkv_ref, bqkv_ref, wo_ref, bo_ref,
        ln2_g_ref, ln2_b_ref, wfc_ref, bfc_ref, wpr_ref, bpr_ref,
        lnf_g_ref, lnf_b_ref, tproj_ref,
        # output
        out_ref,
        # scratch
        x_scr,
        *, num_heads):
    """grid = (batch, layer); x stays resident in VMEM across the layer axis."""
    b = pl.program_id(0)
    l = pl.program_id(1)
    L, D = x_scr.shape
    hd = D // num_heads
    scale = hd ** -0.5

    # ---- layer 0: fold in the positional embedding -------------------------
    @pl.when(l == 0)
    def _():
        x_scr[...] = prompts_ref[...] + pos_ref[...]

    x = x_scr[...]

    # ---- pre-LN multi-head causal self-attention + residual ---------------
    xn = _layernorm(x, ln1_g_ref[...], ln1_b_ref[...])
    qkv = jnp.dot(xn.astype(jnp.bfloat16), wqkv_ref[...],
                  preferred_element_type=jnp.float32) + bqkv_ref[...]

    ctx_parts = []
    for h in range(num_heads):  # static unroll over heads
        qh = qkv[:, h * hd:(h + 1) * hd].astype(jnp.bfloat16)
        kh = qkv[:, D + h * hd:D + (h + 1) * hd].astype(jnp.bfloat16)
        vh = qkv[:, 2 * D + h * hd:2 * D + (h + 1) * hd].astype(jnp.bfloat16)
        # contract dim 1 of q with dim 1 of k -> no explicit K transpose
        s = jax.lax.dot_general(qh, kh, (((1,), (1,)), ((), ())),
                                preferred_element_type=jnp.float32) * scale
        s = s + mask_ref[...]                       # precomputed fp32 causal mask
        s = s - jnp.max(s, axis=-1, keepdims=True)
        p = jnp.exp(s)
        p = p * pl.reciprocal(jnp.sum(p, axis=-1, keepdims=True), approx=True)
        ctx_parts.append(jnp.dot(p.astype(jnp.bfloat16), vh,
                                 preferred_element_type=jnp.float32))
    ctx = jnp.concatenate(ctx_parts, axis=-1)                     # (L, D)
    attn_out = jnp.dot(ctx.astype(jnp.bfloat16), wo_ref[...],      # one K=D matmul
                       preferred_element_type=jnp.float32) + bo_ref[...]
    x = x + attn_out

    # ---- pre-LN MLP (c_fc -> QuickGELU -> c_proj) + residual ---------------
    xn2 = _layernorm(x, ln2_g_ref[...], ln2_b_ref[...])
    hmid = jnp.dot(xn2.astype(jnp.bfloat16), wfc_ref[...],
                   preferred_element_type=jnp.float32) + bfc_ref[...]
    hmid = hmid * (1.0 / (1.0 + jnp.exp(-1.702 * hmid)))           # QuickGELU (fp32)
    mlp_out = jnp.dot(hmid.astype(jnp.bfloat16), wpr_ref[...],
                      preferred_element_type=jnp.float32) + bpr_ref[...]
    x = x + mlp_out
    x_scr[...] = x

    # ---- last layer: ln_final on the EOT row + text projection -------------
    @pl.when(l == pl.num_programs(1) - 1)
    def _():
        eot = eot_ref[b]
        row_ids = jax.lax.broadcasted_iota(jnp.int32, (L, 1), 0)
        sel = (row_ids == eot).astype(jnp.float32)                 # one-hot (L, 1)
        pooled = jnp.sum(x * sel, axis=0, keepdims=True)           # (1, D)
        pooled = _layernorm(pooled, lnf_g_ref[...], lnf_b_ref[...])
        out_ref[...] = jnp.dot(pooled.astype(jnp.bfloat16), tproj_ref[...],
                               preferred_element_type=jnp.float32)


# ----------------------------- wrapper -------------------------------------

def text_encoder_forward(params, prompts, tokenized_prompts, num_heads):
    N, L, D = prompts.shape
    layers = params["w_qkv"].shape[0]
    Dh = params["w_fc"].shape[2]
    E = params["text_projection"].shape[1]

    # glue: EOT index (argmax over tokens) stays in JAX, fed via scalar prefetch
    eot = jnp.argmax(tokenized_prompts, axis=-1).astype(jnp.int32)
    row = jnp.arange(L)[:, None]
    col = jnp.arange(L)[None, :]
    causal = jnp.where(col <= row, 0.0, -1e9).astype(jnp.float32)

    batch3 = lambda b, l, eot: (b, 0, 0)
    layer3 = lambda b, l, eot: (l, 0, 0)
    const2 = lambda b, l, eot: (0, 0)

    out = pl.pallas_call(
        functools.partial(fused_text_encoder_kernel, num_heads=num_heads),
        out_shape=jax.ShapeDtypeStruct((N, 1, E), jnp.float32),
        grid_spec=pltpu.PrefetchScalarGridSpec(
            num_scalar_prefetch=1,
            grid=(N, layers),
            in_specs=[
                pl.BlockSpec((None, L, D), batch3),       # prompts
                pl.BlockSpec((L, D), const2),             # positional embedding
                pl.BlockSpec((L, L), const2),             # causal mask
                pl.BlockSpec((None, 1, D), layer3),       # ln1 gamma
                pl.BlockSpec((None, 1, D), layer3),       # ln1 beta
                pl.BlockSpec((None, D, 3 * D), layer3),   # W_qkv (bf16)
                pl.BlockSpec((None, 1, 3 * D), layer3),   # b_qkv
                pl.BlockSpec((None, D, D), layer3),       # W_out (bf16)
                pl.BlockSpec((None, 1, D), layer3),       # b_out
                pl.BlockSpec((None, 1, D), layer3),       # ln2 gamma
                pl.BlockSpec((None, 1, D), layer3),       # ln2 beta
                pl.BlockSpec((None, D, Dh), layer3),      # W_fc (bf16)
                pl.BlockSpec((None, 1, Dh), layer3),      # b_fc
                pl.BlockSpec((None, Dh, D), layer3),      # W_proj (bf16)
                pl.BlockSpec((None, 1, D), layer3),       # b_proj
                pl.BlockSpec((1, D), const2),             # ln_final gamma
                pl.BlockSpec((1, D), const2),             # ln_final beta
                pl.BlockSpec((D, E), const2),             # text_projection (bf16)
            ],
            out_specs=pl.BlockSpec((None, 1, E), batch3),
            scratch_shapes=[pltpu.VMEM((L, D), jnp.float32)],
        ),
        compiler_params=pltpu.CompilerParams(
            dimension_semantics=("parallel", "arbitrary")),
    )(eot, prompts, params["pos"], causal,
      params["ln1_g"], params["ln1_b"], params["w_qkv"], params["b_qkv"],
      params["w_out"], params["b_out"],
      params["ln2_g"], params["ln2_b"], params["w_fc"], params["b_fc"],
      params["w_proj"], params["b_proj"],
      params["ln_final_g"], params["ln_final_b"], params["text_projection"])
    return out.reshape(N, E)


# ----------------------------- reference (pure JAX) -------------------------

def reference_forward(params, prompts, tokenized_prompts, num_heads):
    N, L, D = prompts.shape
    hd = D // num_heads
    layers = params["w_qkv"].shape[0]
    f32 = jnp.float32
    x = prompts + params["pos"][None]
    row = jnp.arange(L)[:, None]
    col = jnp.arange(L)[None, :]
    causal = jnp.where(col <= row, 0.0, -1e9).astype(f32)
    for i in range(layers):
        w_qkv = params["w_qkv"][i].astype(f32)
        w_out = params["w_out"][i].astype(f32)
        w_fc = params["w_fc"][i].astype(f32)
        w_proj = params["w_proj"][i].astype(f32)
        xn = _layernorm(x, params["ln1_g"][i], params["ln1_b"][i])
        qkv = xn @ w_qkv + params["b_qkv"][i]
        q, k, v = jnp.split(qkv, 3, axis=-1)
        q = q.reshape(N, L, num_heads, hd)
        k = k.reshape(N, L, num_heads, hd)
        v = v.reshape(N, L, num_heads, hd)
        s = jnp.einsum("nqhd,nkhd->nhqk", q, k) * (hd ** -0.5) + causal
        p = jax.nn.softmax(s, axis=-1)
        ctx = jnp.einsum("nhqk,nkhd->nqhd", p, v).reshape(N, L, D)
        x = x + ctx @ w_out + params["b_out"][i]
        xn = _layernorm(x, params["ln2_g"][i], params["ln2_b"][i])
        h = xn @ w_fc + params["b_fc"][i]
        h = h * jax.nn.sigmoid(1.702 * h)
        x = x + h @ w_proj + params["b_proj"][i]
    x = _layernorm(x, params["ln_final_g"], params["ln_final_b"])
    eot = jnp.argmax(tokenized_prompts, axis=-1)
    pooled = x[jnp.arange(N), eot]
    return pooled @ params["text_projection"].astype(f32)


# ----------------------------- params ---------------------------------------

def init_params(key, L, D, layers, E):
    Dh = 4 * D
    k_pos, k_proj, k_lnfg, k_lnfb, *lkeys = jax.random.split(key, 4 + layers)
    ln1_g, ln1_b, ln2_g, ln2_b = [], [], [], []
    w_qkv, b_qkv, w_out, b_out = [], [], [], []
    w_fc, b_fc, w_proj, b_proj = [], [], [], []
    for lk in lkeys:
        ks = jax.random.split(lk, 12)
        ln1_g.append(1.0 + 0.05 * jax.random.normal(ks[0], (1, D), jnp.float32))
        ln1_b.append(0.05 * jax.random.normal(ks[1], (1, D), jnp.float32))
        ln2_g.append(1.0 + 0.05 * jax.random.normal(ks[2], (1, D), jnp.float32))
        ln2_b.append(0.05 * jax.random.normal(ks[3], (1, D), jnp.float32))
        w_qkv.append(0.02 * jax.random.normal(ks[4], (D, 3 * D), jnp.float32))
        b_qkv.append(0.01 * jax.random.normal(ks[5], (1, 3 * D), jnp.float32))
        w_out.append(0.02 * jax.random.normal(ks[6], (D, D), jnp.float32))
        b_out.append(0.01 * jax.random.normal(ks[7], (1, D), jnp.float32))
        w_fc.append(0.02 * jax.random.normal(ks[8], (D, Dh), jnp.float32))
        b_fc.append(0.01 * jax.random.normal(ks[9], (1, Dh), jnp.float32))
        w_proj.append(0.02 * jax.random.normal(ks[10], (Dh, D), jnp.float32))
        b_proj.append(0.01 * jax.random.normal(ks[11], (1, D), jnp.float32))
    # weight matrices stored bf16 (MXU operands, halves HBM/VMEM traffic);
    # biases / LayerNorm params kept fp32 (VPU path).
    return {
        "pos": 0.01 * jax.random.normal(k_pos, (L, D), jnp.float32),
        "ln_final_g": 1.0 + 0.05 * jax.random.normal(k_lnfg, (1, D), jnp.float32),
        "ln_final_b": 0.05 * jax.random.normal(k_lnfb, (1, D), jnp.float32),
        "text_projection": (0.02 * jax.random.normal(k_proj, (D, E), jnp.float32)
                            ).astype(jnp.bfloat16),
        "ln1_g": jnp.stack(ln1_g), "ln1_b": jnp.stack(ln1_b),
        "ln2_g": jnp.stack(ln2_g), "ln2_b": jnp.stack(ln2_b),
        "w_qkv": jnp.stack(w_qkv).astype(jnp.bfloat16), "b_qkv": jnp.stack(b_qkv),
        "w_out": jnp.stack(w_out).astype(jnp.bfloat16), "b_out": jnp.stack(b_out),
        "w_fc": jnp.stack(w_fc).astype(jnp.bfloat16), "b_fc": jnp.stack(b_fc),
        "w_proj": jnp.stack(w_proj).astype(jnp.bfloat16), "b_proj": jnp.stack(b_proj),
    }


if __name__ == "__main__":
    N, L, D, H, LAYERS, E = 2, 8, 32, 4, 2, 32

    key = jax.random.PRNGKey(0)
    k_prompts, k_tok, k_params = jax.random.split(key, 3)
    prompts = jax.random.normal(k_prompts, (N, L, D), jnp.float32)
    tokenized_prompts = jax.random.randint(k_tok, (N, L), 1, 100, dtype=jnp.int32)
    params = init_params(k_params, L, D, LAYERS, E)

    out = text_encoder_forward(params, prompts, tokenized_prompts, H)
    out = jax.block_until_ready(out)

    ref = reference_forward(params, prompts, tokenized_prompts, H)
    assert out.shape == (N, E), out.shape
    assert jnp.allclose(out, ref, atol=5e-3, rtol=5e-3), (
        "mismatch vs reference: max abs diff "
        f"{float(jnp.max(jnp.abs(out - ref)))}")
    print("KERNEL_OK")
</pallas_src>

<mosaic_0001>
module attributes {stable_mosaic.version = 11 : i64} {
  func.func @fused_text_encoder_kernel(%arg0: i32, %arg1: i32, %arg2: memref<2xi32, #tpu.memory_space<smem>>, %arg3: memref<1x8x32xf32, #tpu.memory_space<vmem>>, %arg4: memref<8x32xf32, #tpu.memory_space<vmem>>, %arg5: memref<8x8xf32, #tpu.memory_space<vmem>>, %arg6: memref<1x1x32xf32, #tpu.memory_space<vmem>>, %arg7: memref<1x1x32xf32, #tpu.memory_space<vmem>>, %arg8: memref<1x32x96xbf16, #tpu.memory_space<vmem>>, %arg9: memref<1x1x96xf32, #tpu.memory_space<vmem>>, %arg10: memref<1x32x32xbf16, #tpu.memory_space<vmem>>, %arg11: memref<1x1x32xf32, #tpu.memory_space<vmem>>, %arg12: memref<1x1x32xf32, #tpu.memory_space<vmem>>, %arg13: memref<1x1x32xf32, #tpu.memory_space<vmem>>, %arg14: memref<1x32x128xbf16, #tpu.memory_space<vmem>>, %arg15: memref<1x1x128xf32, #tpu.memory_space<vmem>>, %arg16: memref<1x128x32xbf16, #tpu.memory_space<vmem>>, %arg17: memref<1x1x32xf32, #tpu.memory_space<vmem>>, %arg18: memref<1x32xf32, #tpu.memory_space<vmem>>, %arg19: memref<1x32xf32, #tpu.memory_space<vmem>>, %arg20: memref<32x32xbf16, #tpu.memory_space<vmem>>, %arg21: memref<1x1x32xf32, #tpu.memory_space<vmem>>, %arg22: memref<8x32xf32, #tpu.memory_space<vmem>>) attributes {dimension_semantics = [#tpu.dimension_semantics<parallel>, #tpu.dimension_semantics<arbitrary>], iteration_bounds = array<i64: 2, 2>, scalar_prefetch = 1 : i64, scratch_operands = 1 : i64, tpu.core_type = #tpu.core_type<tc>, window_params = [{transform_indices = @transform_0, window_bounds = array<i64: 1, 8, 32>}, {pipeline_mode = #tpu.pipeline_mode<synchronous>, transform_indices = @transform_1, window_bounds = array<i64: 8, 32>}, {pipeline_mode = #tpu.pipeline_mode<synchronous>, transform_indices = @transform_2, window_bounds = array<i64: 8, 8>}, {transform_indices = @transform_3, window_bounds = array<i64: 1, 1, 32>}, {transform_indices = @transform_4, window_bounds = array<i64: 1, 1, 32>}, {transform_indices = @transform_5, window_bounds = array<i64: 1, 32, 96>}, {transform_indices = @transform_6, window_bounds = array<i64: 1, 1, 96>}, {transform_indices = @transform_7, window_bounds = array<i64: 1, 32, 32>}, {transform_indices = @transform_8, window_bounds = array<i64: 1, 1, 32>}, {transform_indices = @transform_9, window_bounds = array<i64: 1, 1, 32>}, {transform_indices = @transform_10, window_bounds = array<i64: 1, 1, 32>}, {transform_indices = @transform_11, window_bounds = array<i64: 1, 32, 128>}, {transform_indices = @transform_12, window_bounds = array<i64: 1, 1, 128>}, {transform_indices = @transform_13, window_bounds = array<i64: 1, 128, 32>}, {transform_indices = @transform_14, window_bounds = array<i64: 1, 1, 32>}, {pipeline_mode = #tpu.pipeline_mode<synchronous>, transform_indices = @transform_15, window_bounds = array<i64: 1, 32>}, {pipeline_mode = #tpu.pipeline_mode<synchronous>, transform_indices = @transform_16, window_bounds = array<i64: 1, 32>}, {pipeline_mode = #tpu.pipeline_mode<synchronous>, transform_indices = @transform_17, window_bounds = array<i64: 32, 32>}, {transform_indices = @transform_18, window_bounds = array<i64: 1, 1, 32>}]} {
    %c0_i32 = arith.constant 0 : i32
    %0 = arith.cmpi eq, %arg1, %c0_i32 : i32
    %1 = arith.extui %0 : i1 to i32
    %c0_i32_0 = arith.constant 0 : i32
    %2 = arith.cmpi ne, %1, %c0_i32_0 : i32
    scf.if %2 {
      %c0_85 = arith.constant 0 : index
      %c0_86 = arith.constant 0 : index
      %c0_87 = arith.constant 0 : index
      %195 = vector.load %arg3[%c0_85, %c0_86, %c0_87] : memref<1x8x32xf32, #tpu.memory_space<vmem>>, vector<1x8x32xf32>
      %196 = vector.shape_cast %195 : vector<1x8x32xf32> to vector<8x32xf32>
      %c0_88 = arith.constant 0 : index
      %c0_89 = arith.constant 0 : index
      %197 = vector.load %arg4[%c0_88, %c0_89] : memref<8x32xf32, #tpu.memory_space<vmem>>, vector<8x32xf32>
      %198 = arith.addf %196, %197 : vector<8x32xf32>
      %c0_90 = arith.constant 0 : index
      %c0_91 = arith.constant 0 : index
      %199 = vector.load %arg22[%c0_90, %c0_91] : memref<8x32xf32, #tpu.memory_space<vmem>>, vector<8x32xf32>
      tpu.vector_store %arg22[%c0_90, %c0_91], %198 {strides = array<i32>} : memref<8x32xf32, #tpu.memory_space<vmem>>, vector<8x32xf32>,
    } else {
    }
    %c0 = arith.constant 0 : index
    %c0_1 = arith.constant 0 : index
    %3 = vector.load %arg22[%c0, %c0_1] : memref<8x32xf32, #tpu.memory_space<vmem>>, vector<8x32xf32>
    %c0_2 = arith.constant 0 : index
    %c0_3 = arith.constant 0 : index
    %c0_4 = arith.constant 0 : index
    %4 = vector.load %arg6[%c0_2, %c0_3, %c0_4] : memref<1x1x32xf32, #tpu.memory_space<vmem>>, vector<1x1x32xf32>
    %5 = vector.shape_cast %4 : vector<1x1x32xf32> to vector<1x32xf32>
    %c0_5 = arith.constant 0 : index
    %c0_6 = arith.constant 0 : index
    %c0_7 = arith.constant 0 : index
    %6 = vector.load %arg7[%c0_5, %c0_6, %c0_7] : memref<1x1x32xf32, #tpu.memory_space<vmem>>, vector<1x1x32xf32>
    %7 = vector.shape_cast %6 : vector<1x1x32xf32> to vector<1x32xf32>
    %cst = arith.constant dense<0.000000e+00> : vector<8xf32>
    %8 = vector.multi_reduction <add>, %3, %cst [1] : vector<8x32xf32> to vector<8xf32>
    %9 = vector.shape_cast %8 : vector<8xf32> to vector<8x1xf32>
    %cst_8 = arith.constant 3.200000e+01 : f32
    %10 = vector.broadcast %cst_8 : f32 to vector<8x1xf32>
    %11 = arith.divf %9, %10 : vector<8x1xf32>
    %12 = vector.broadcast %11 : vector<8x1xf32> to vector<8x32xf32>
    %13 = arith.subf %3, %12 : vector<8x32xf32>
    %14 = arith.mulf %13, %13 : vector<8x32xf32>
    %cst_9 = arith.constant dense<0.000000e+00> : vector<8xf32>
    %15 = vector.multi_reduction <add>, %14, %cst_9 [1] : vector<8x32xf32> to vector<8xf32>
    %16 = vector.shape_cast %15 : vector<8xf32> to vector<8x1xf32>
    %cst_10 = arith.constant 3.200000e+01 : f32
    %17 = vector.broadcast %cst_10 : f32 to vector<8x1xf32>
    %18 = arith.divf %16, %17 : vector<8x1xf32>
    %19 = vector.broadcast %11 : vector<8x1xf32> to vector<8x32xf32>
    %20 = arith.subf %3, %19 : vector<8x32xf32>
    %cst_11 = arith.constant 9.99999974E-6 : f32
    %21 = vector.broadcast %cst_11 : f32 to vector<8x1xf32>
    %22 = arith.addf %18, %21 : vector<8x1xf32>
    %23 = math.rsqrt %22 : vector<8x1xf32>
    %24 = vector.broadcast %23 : vector<8x1xf32> to vector<8x32xf32>
    %25 = arith.mulf %20, %24 : vector<8x32xf32>
    %26 = vector.broadcast %5 : vector<1x32xf32> to vector<8x32xf32>
    %27 = arith.mulf %25, %26 : vector<8x32xf32>
    %28 = vector.broadcast %7 : vector<1x32xf32> to vector<8x32xf32>
    %29 = arith.addf %27, %28 : vector<8x32xf32>
    %30 = arith.truncf %29 : vector<8x32xf32> to vector<8x32xbf16>
    %c0_12 = arith.constant 0 : index
    %c0_13 = arith.constant 0 : index
    %c0_14 = arith.constant 0 : index
    %31 = vector.load %arg8[%c0_12, %c0_13, %c0_14] : memref<1x32x96xbf16, #tpu.memory_space<vmem>>, vector<1x32x96xbf16>
    %32 = vector.shape_cast %31 : vector<1x32x96xbf16> to vector<32x96xbf16>
    %cst_15 = arith.constant dense<0.000000e+00> : vector<8x96xf32>
    %33 = tpu.matmul %30, %32, %cst_15 {dimension_numbers = #tpu.dot_dimension_numbers<[1], [0], [0], [1], [0, 0, 1, 1], [], []>} : vector<8x32xbf16>, vector<32x96xbf16>, vector<8x96xf32> -> vector<8x96xf32>
    %c0_16 = arith.constant 0 : index
    %c0_17 = arith.constant 0 : index
    %c0_18 = arith.constant 0 : index
    %34 = vector.load %arg9[%c0_16, %c0_17, %c0_18] : memref<1x1x96xf32, #tpu.memory_space<vmem>>, vector<1x1x96xf32>
    %35 = vector.shape_cast %34 : vector<1x1x96xf32> to vector<1x96xf32>
    %36 = vector.broadcast %35 : vector<1x96xf32> to vector<8x96xf32>
    %37 = arith.addf %33, %36 : vector<8x96xf32>
    %38 = vector.extract_strided_slice %37 {offsets = [0, 0], sizes = [8, 8], strides = [1, 1]} : vector<8x96xf32> to vector<8x8xf32>
    %39 = arith.truncf %38 : vector<8x8xf32> to vector<8x8xbf16>
    %40 = vector.extract_strided_slice %37 {offsets = [0, 32], sizes = [8, 8], strides = [1, 1]} : vector<8x96xf32> to vector<8x8xf32>
    %41 = arith.truncf %40 : vector<8x8xf32> to vector<8x8xbf16>
    %42 = vector.extract_strided_slice %37 {offsets = [0, 64], sizes = [8, 8], strides = [1, 1]} : vector<8x96xf32> to vector<8x8xf32>
    %43 = arith.truncf %42 : vector<8x8xf32> to vector<8x8xbf16>
    %cst_19 = arith.constant dense<0.000000e+00> : vector<8x8xf32>
    %44 = tpu.matmul %39, %41, %cst_19 {dimension_numbers = #tpu.dot_dimension_numbers<[1], [1], [0], [0], [0, 0, 1, 0], [], []>} : vector<8x8xbf16>, vector<8x8xbf16>, vector<8x8xf32> -> vector<8x8xf32>
    %cst_20 = arith.constant 0.353553385 : f32
    %45 = vector.broadcast %cst_20 : f32 to vector<8x8xf32>
    %46 = arith.mulf %44, %45 : vector<8x8xf32>
    %c0_21 = arith.constant 0 : index
    %c0_22 = arith.constant 0 : index
    %47 = vector.load %arg5[%c0_21, %c0_22] : memref<8x8xf32, #tpu.memory_space<vmem>>, vector<8x8xf32>
    %48 = arith.addf %46, %47 : vector<8x8xf32>
    %cst_23 = arith.constant dense<0xFF800000> : vector<8xf32>
    %49 = vector.multi_reduction <maximumf>, %48, %cst_23 [1] : vector<8x8xf32> to vector<8xf32>
    %50 = vector.shape_cast %49 : vector<8xf32> to vector<8x1xf32>
    %51 = vector.broadcast %50 : vector<8x1xf32> to vector<8x8xf32>
    %52 = arith.subf %48, %51 : vector<8x8xf32>
    %53 = math.exp %52 : vector<8x8xf32>
    %cst_24 = arith.constant dense<0.000000e+00> : vector<8xf32>
    %54 = vector.multi_reduction <add>, %53, %cst_24 [1] : vector<8x8xf32> to vector<8xf32>
    %55 = vector.shape_cast %54 : vector<8xf32> to vector<8x1xf32>
    %56 = tpu.reciprocal %55 {approx = true} : vector<8x1xf32> -> vector<8x1xf32>
    %57 = vector.broadcast %56 : vector<8x1xf32> to vector<8x8xf32>
    %58 = arith.mulf %53, %57 : vector<8x8xf32>
    %59 = arith.truncf %58 : vector<8x8xf32> to vector<8x8xbf16>
    %cst_25 = arith.constant dense<0.000000e+00> : vector<8x8xf32>
    %60 = tpu.matmul %59, %43, %cst_25 {dimension_numbers = #tpu.dot_dimension_numbers<[1], [0], [0], [1], [0, 0, 1, 1], [], []>} : vector<8x8xbf16>, vector<8x8xbf16>, vector<8x8xf32> -> vector<8x8xf32>
    %61 = vector.extract_strided_slice %37 {offsets = [0, 8], sizes = [8, 8], strides = [1, 1]} : vector<8x96xf32> to vector<8x8xf32>
    %62 = arith.truncf %61 : vector<8x8xf32> to vector<8x8xbf16>
    %63 = vector.extract_strided_slice %37 {offsets = [0, 40], sizes = [8, 8], strides = [1, 1]} : vector<8x96xf32> to vector<8x8xf32>
    %64 = arith.truncf %63 : vector<8x8xf32> to vector<8x8xbf16>
    %65 = vector.extract_strided_slice %37 {offsets = [0, 72], sizes = [8, 8], strides = [1, 1]} : vector<8x96xf32> to vector<8x8xf32>
    %66 = arith.truncf %65 : vector<8x8xf32> to vector<8x8xbf16>
    %cst_26 = arith.constant dense<0.000000e+00> : vector<8x8xf32>
    %67 = tpu.matmul %62, %64, %cst_26 {dimension_numbers = #tpu.dot_dimension_numbers<[1], [1], [0], [0], [0, 0, 1, 0], [], []>} : vector<8x8xbf16>, vector<8x8xbf16>, vector<8x8xf32> -> vector<8x8xf32>
    %cst_27 = arith.constant 0.353553385 : f32
    %68 = vector.broadcast %cst_27 : f32 to vector<8x8xf32>
    %69 = arith.mulf %67, %68 : vector<8x8xf32>
    %c0_28 = arith.constant 0 : index
    %c0_29 = arith.constant 0 : index
    %70 = vector.load %arg5[%c0_28, %c0_29] : memref<8x8xf32, #tpu.memory_space<vmem>>, vector<8x8xf32>
    %71 = arith.addf %69, %70 : vector<8x8xf32>
    %cst_30 = arith.constant dense<0xFF800000> : vector<8xf32>
    %72 = vector.multi_reduction <maximumf>, %71, %cst_30 [1] : vector<8x8xf32> to vector<8xf32>
    %73 = vector.shape_cast %72 : vector<8xf32> to vector<8x1xf32>
    %74 = vector.broadcast %73 : vector<8x1xf32> to vector<8x8xf32>
    %75 = arith.subf %71, %74 : vector<8x8xf32>
    %76 = math.exp %75 : vector<8x8xf32>
    %cst_31 = arith.constant dense<0.000000e+00> : vector<8xf32>
    %77 = vector.multi_reduction <add>, %76, %cst_31 [1] : vector<8x8xf32> to vector<8xf32>
    %78 = vector.shape_cast %77 : vector<8xf32> to vector<8x1xf32>
    %79 = tpu.reciprocal %78 {approx = true} : vector<8x1xf32> -> vector<8x1xf32>
    %80 = vector.broadcast %79 : vector<8x1xf32> to vector<8x8xf32>
    %81 = arith.mulf %76, %80 : vector<8x8xf32>
    %82 = arith.truncf %81 : vector<8x8xf32> to vector<8x8xbf16>
    %cst_32 = arith.constant dense<0.000000e+00> : vector<8x8xf32>
    %83 = tpu.matmul %82, %66, %cst_32 {dimension_numbers = #tpu.dot_dimension_numbers<[1], [0], [0], [1], [0, 0, 1, 1], [], []>} : vector<8x8xbf16>, vector<8x8xbf16>, vector<8x8xf32> -> vector<8x8xf32>
    %84 = vector.extract_strided_slice %37 {offsets = [0, 16], sizes = [8, 8], strides = [1, 1]} : vector<8x96xf32> to vector<8x8xf32>
    %85 = arith.truncf %84 : vector<8x8xf32> to vector<8x8xbf16>
    %86 = vector.extract_strided_slice %37 {offsets = [0, 48], sizes = [8, 8], strides = [1, 1]} : vector<8x96xf32> to vector<8x8xf32>
    %87 = arith.truncf %86 : vector<8x8xf32> to vector<8x8xbf16>
    %88 = vector.extract_strided_slice %37 {offsets = [0, 80], sizes = [8, 8], strides = [1, 1]} : vector<8x96xf32> to vector<8x8xf32>
    %89 = arith.truncf %88 : vector<8x8xf32> to vector<8x8xbf16>
    %cst_33 = arith.constant dense<0.000000e+00> : vector<8x8xf32>
    %90 = tpu.matmul %85, %87, %cst_33 {dimension_numbers = #tpu.dot_dimension_numbers<[1], [1], [0], [0], [0, 0, 1, 0], [], []>} : vector<8x8xbf16>, vector<8x8xbf16>, vector<8x8xf32> -> vector<8x8xf32>
    %cst_34 = arith.constant 0.353553385 : f32
    %91 = vector.broadcast %cst_34 : f32 to vector<8x8xf32>
    %92 = arith.mulf %90, %91 : vector<8x8xf32>
    %c0_35 = arith.constant 0 : index
    %c0_36 = arith.constant 0 : index
    %93 = vector.load %arg5[%c0_35, %c0_36] : memref<8x8xf32, #tpu.memory_space<vmem>>, vector<8x8xf32>
    %94 = arith.addf %92, %93 : vector<8x8xf32>
    %cst_37 = arith.constant dense<0xFF800000> : vector<8xf32>
    %95 = vector.multi_reduction <maximumf>, %94, %cst_37 [1] : vector<8x8xf32> to vector<8xf32>
    %96 = vector.shape_cast %95 : vector<8xf32> to vector<8x1xf32>
    %97 = vector.broadcast %96 : vector<8x1xf32> to vector<8x8xf32>
    %98 = arith.subf %94, %97 : vector<8x8xf32>
    %99 = math.exp %98 : vector<8x8xf32>
    %cst_38 = arith.constant dense<0.000000e+00> : vector<8xf32>
    %100 = vector.multi_reduction <add>, %99, %cst_38 [1] : vector<8x8xf32> to vector<8xf32>
    %101 = vector.shape_cast %100 : vector<8xf32> to vector<8x1xf32>
    %102 = tpu.reciprocal %101 {approx = true} : vector<8x1xf32> -> vector<8x1xf32>
    %103 = vector.broadcast %102 : vector<8x1xf32> to vector<8x8xf32>
    %104 = arith.mulf %99, %103 : vector<8x8xf32>
    %105 = arith.truncf %104 : vector<8x8xf32> to vector<8x8xbf16>
    %cst_39 = arith.constant dense<0.000000e+00> : vector<8x8xf32>
    %106 = tpu.matmul %105, %89, %cst_39 {dimension_numbers = #tpu.dot_dimension_numbers<[1], [0], [0], [1], [0, 0, 1, 1], [], []>} : vector<8x8xbf16>, vector<8x8xbf16>, vector<8x8xf32> -> vector<8x8xf32>
    %107 = vector.extract_strided_slice %37 {offsets = [0, 24], sizes = [8, 8], strides = [1, 1]} : vector<8x96xf32> to vector<8x8xf32>
    %108 = arith.truncf %107 : vector<8x8xf32> to vector<8x8xbf16>
    %109 = vector.extract_strided_slice %37 {offsets = [0, 56], sizes = [8, 8], strides = [1, 1]} : vector<8x96xf32> to vector<8x8xf32>
    %110 = arith.truncf %109 : vector<8x8xf32> to vector<8x8xbf16>
    %111 = vector.extract_strided_slice %37 {offsets = [0, 88], sizes = [8, 8], strides = [1, 1]} : vector<8x96xf32> to vector<8x8xf32>
    %112 = arith.truncf %111 : vector<8x8xf32> to vector<8x8xbf16>
    %cst_40 = arith.constant dense<0.000000e+00> : vector<8x8xf32>
    %113 = tpu.matmul %108, %110, %cst_40 {dimension_numbers = #tpu.dot_dimension_numbers<[1], [1], [0], [0], [0, 0, 1, 0], [], []>} : vector<8x8xbf16>, vector<8x8xbf16>, vector<8x8xf32> -> vector<8x8xf32>
    %cst_41 = arith.constant 0.353553385 : f32
    %114 = vector.broadcast %cst_41 : f32 to vector<8x8xf32>
    %115 = arith.mulf %113, %114 : vector<8x8xf32>
    %c0_42 = arith.constant 0 : index
    %c0_43 = arith.constant 0 : index
    %116 = vector.load %arg5[%c0_42, %c0_43] : memref<8x8xf32, #tpu.memory_space<vmem>>, vector<8x8xf32>
    %117 = arith.addf %115, %116 : vector<8x8xf32>
    %cst_44 = arith.constant dense<0xFF800000> : vector<8xf32>
    %118 = vector.multi_reduction <maximumf>, %117, %cst_44 [1] : vector<8x8xf32> to vector<8xf32>
    %119 = vector.shape_cast %118 : vector<8xf32> to vector<8x1xf32>
    %120 = vector.broadcast %119 : vector<8x1xf32> to vector<8x8xf32>
    %121 = arith.subf %117, %120 : vector<8x8xf32>
    %122 = math.exp %121 : vector<8x8xf32>
    %cst_45 = arith.constant dense<0.000000e+00> : vector<8xf32>
    %123 = vector.multi_reduction <add>, %122, %cst_45 [1] : vector<8x8xf32> to vector<8xf32>
    %124 = vector.shape_cast %123 : vector<8xf32> to vector<8x1xf32>
    %125 = tpu.reciprocal %124 {approx = true} : vector<8x1xf32> -> vector<8x1xf32>
    %126 = vector.broadcast %125 : vector<8x1xf32> to vector<8x8xf32>
    %127 = arith.mulf %122, %126 : vector<8x8xf32>
    %128 = arith.truncf %127 : vector<8x8xf32> to vector<8x8xbf16>
    %cst_46 = arith.constant dense<0.000000e+00> : vector<8x8xf32>
    %129 = tpu.matmul %128, %112, %cst_46 {dimension_numbers = #tpu.dot_dimension_numbers<[1], [0], [0], [1], [0, 0, 1, 1], [], []>} : vector<8x8xbf16>, vector<8x8xbf16>, vector<8x8xf32> -> vector<8x8xf32>
    %130 = tpu.concatenate %60, %83, %106, %129 in 1 : vector<8x8xf32>, vector<8x8xf32>, vector<8x8xf32>, vector<8x8xf32> -> vector<8x32xf32>
    %131 = arith.truncf %130 : vector<8x32xf32> to vector<8x32xbf16>
    %c0_47 = arith.constant 0 : index
    %c0_48 = arith.constant 0 : index
    %c0_49 = arith.constant 0 : index
    %132 = vector.load %arg10[%c0_47, %c0_48, %c0_49] : memref<1x32x32xbf16, #tpu.memory_space<vmem>>, vector<1x32x32xbf16>
    %133 = vector.shape_cast %132 : vector<1x32x32xbf16> to vector<32x32xbf16>
    %cst_50 = arith.constant dense<0.000000e+00> : vector<8x32xf32>
    %134 = tpu.matmul %131, %133, %cst_50 {dimension_numbers = #tpu.dot_dimension_numbers<[1], [0], [0], [1], [0, 0, 1, 1], [], []>} : vector<8x32xbf16>, vector<32x32xbf16>, vector<8x32xf32> -> vector<8x32xf32>
    %c0_51 = arith.constant 0 : index
    %c0_52 = arith.constant 0 : index
    %c0_53 = arith.constant 0 : index
    %135 = vector.load %arg11[%c0_51, %c0_52, %c0_53] : memref<1x1x32xf32, #tpu.memory_space<vmem>>, vector<1x1x32xf32>
    %136 = vector.shape_cast %135 : vector<1x1x32xf32> to vector<1x32xf32>
    %137 = vector.broadcast %136 : vector<1x32xf32> to vector<8x32xf32>
    %138 = arith.addf %134, %137 : vector<8x32xf32>
    %139 = arith.addf %3, %138 : vector<8x32xf32>
    %c0_54 = arith.constant 0 : index
    %c0_55 = arith.constant 0 : index
    %c0_56 = arith.constant 0 : index
    %140 = vector.load %arg12[%c0_54, %c0_55, %c0_56] : memref<1x1x32xf32, #tpu.memory_space<vmem>>, vector<1x1x32xf32>
    %141 = vector.shape_cast %140 : vector<1x1x32xf32> to vector<1x32xf32>
    %c0_57 = arith.constant 0 : index
    %c0_58 = arith.constant 0 : index
    %c0_59 = arith.constant 0 : index
    %142 = vector.load %arg13[%c0_57, %c0_58, %c0_59] : memref<1x1x32xf32, #tpu.memory_space<vmem>>, vector<1x1x32xf32>
    %143 = vector.shape_cast %142 : vector<1x1x32xf32> to vector<1x32xf32>
    %cst_60 = arith.constant dense<0.000000e+00> : vector<8xf32>
    %144 = vector.multi_reduction <add>, %139, %cst_60 [1] : vector<8x32xf32> to vector<8xf32>
    %145 = vector.shape_cast %144 : vector<8xf32> to vector<8x1xf32>
    %cst_61 = arith.constant 3.200000e+01 : f32
    %146 = vector.broadcast %cst_61 : f32 to vector<8x1xf32>
    %147 = arith.divf %145, %146 : vector<8x1xf32>
    %148 = vector.broadcast %147 : vector<8x1xf32> to vector<8x32xf32>
    %149 = arith.subf %139, %148 : vector<8x32xf32>
    %150 = arith.mulf %149, %149 : vector<8x32xf32>
    %cst_62 = arith.constant dense<0.000000e+00> : vector<8xf32>
    %151 = vector.multi_reduction <add>, %150, %cst_62 [1] : vector<8x32xf32> to vector<8xf32>
    %152 = vector.shape_cast %151 : vector<8xf32> to vector<8x1xf32>
    %cst_63 = arith.constant 3.200000e+01 : f32
    %153 = vector.broadcast %cst_63 : f32 to vector<8x1xf32>
    %154 = arith.divf %152, %153 : vector<8x1xf32>
    %155 = vector.broadcast %147 : vector<8x1xf32> to vector<8x32xf32>
    %156 = arith.subf %139, %155 : vector<8x32xf32>
    %cst_64 = arith.constant 9.99999974E-6 : f32
    %157 = vector.broadcast %cst_64 : f32 to vector<8x1xf32>
    %158 = arith.addf %154, %157 : vector<8x1xf32>
    %159 = math.rsqrt %158 : vector<8x1xf32>
    %160 = vector.broadcast %159 : vector<8x1xf32> to vector<8x32xf32>
    %161 = arith.mulf %156, %160 : vector<8x32xf32>
    %162 = vector.broadcast %141 : vector<1x32xf32> to vector<8x32xf32>
    %163 = arith.mulf %161, %162 : vector<8x32xf32>
    %164 = vector.broadcast %143 : vector<1x32xf32> to vector<8x32xf32>
    %165 = arith.addf %163, %164 : vector<8x32xf32>
    %166 = arith.truncf %165 : vector<8x32xf32> to vector<8x32xbf16>
    %c0_65 = arith.constant 0 : index
    %c0_66 = arith.constant 0 : index
    %c0_67 = arith.constant 0 : index
    %167 = vector.load %arg14[%c0_65, %c0_66, %c0_67] : memref<1x32x128xbf16, #tpu.memory_space<vmem>>, vector<1x32x128xbf16>
    %168 = vector.shape_cast %167 : vector<1x32x128xbf16> to vector<32x128xbf16>
    %cst_68 = arith.constant dense<0.000000e+00> : vector<8x128xf32>
    %169 = tpu.matmul %166, %168, %cst_68 {dimension_numbers = #tpu.dot_dimension_numbers<[1], [0], [0], [1], [0, 0, 1, 1], [], []>} : vector<8x32xbf16>, vector<32x128xbf16>, vector<8x128xf32> -> vector<8x128xf32>
    %c0_69 = arith.constant 0 : index
    %c0_70 = arith.constant 0 : index
    %c0_71 = arith.constant 0 : index
    %170 = vector.load %arg15[%c0_69, %c0_70, %c0_71] : memref<1x1x128xf32, #tpu.memory_space<vmem>>, vector<1x1x128xf32>
    %171 = vector.shape_cast %170 : vector<1x1x128xf32> to vector<1x128xf32>
    %172 = vector.broadcast %171 : vector<1x128xf32> to vector<8x128xf32>
    %173 = arith.addf %169, %172 : vector<8x128xf32>
    %cst_72 = arith.constant -1.702000e+00 : f32
    %174 = vector.broadcast %cst_72 : f32 to vector<8x128xf32>
    %175 = arith.mulf %174, %173 : vector<8x128xf32>
    %176 = math.exp %175 : vector<8x128xf32>
    %cst_73 = arith.constant 1.000000e+00 : f32
    %177 = vector.broadcast %cst_73 : f32 to vector<8x128xf32>
    %178 = arith.addf %177, %176 : vector<8x128xf32>
    %cst_74 = arith.constant 1.000000e+00 : f32
    %179 = vector.broadcast %cst_74 : f32 to vector<8x128xf32>
    %180 = arith.divf %179, %178 : vector<8x128xf32>
    %181 = arith.mulf %173, %180 : vector<8x128xf32>
    %182 = arith.truncf %181 : vector<8x128xf32> to vector<8x128xbf16>
    %c0_75 = arith.constant 0 : index
    %c0_76 = arith.constant 0 : index
    %c0_77 = arith.constant 0 : index
    %183 = vector.load %arg16[%c0_75, %c0_76, %c0_77] : memref<1x128x32xbf16, #tpu.memory_space<vmem>>, vector<1x128x32xbf16>
    %184 = vector.shape_cast %183 : vector<1x128x32xbf16> to vector<128x32xbf16>
    %cst_78 = arith.constant dense<0.000000e+00> : vector<8x32xf32>
    %185 = tpu.matmul %182, %184, %cst_78 {dimension_numbers = #tpu.dot_dimension_numbers<[1], [0], [0], [1], [0, 0, 1, 1], [], []>} : vector<8x128xbf16>, vector<128x32xbf16>, vector<8x32xf32> -> vector<8x32xf32>
    %c0_79 = arith.constant 0 : index
    %c0_80 = arith.constant 0 : index
    %c0_81 = arith.constant 0 : index
    %186 = vector.load %arg17[%c0_79, %c0_80, %c0_81] : memref<1x1x32xf32, #tpu.memory_space<vmem>>, vector<1x1x32xf32>
    %187 = vector.shape_cast %186 : vector<1x1x32xf32> to vector<1x32xf32>
    %188 = vector.broadcast %187 : vector<1x32xf32> to vector<8x32xf32>
    %189 = arith.addf %185, %188 : vector<8x32xf32>
    %190 = arith.addf %139, %189 : vector<8x32xf32>
    %c0_82 = arith.constant 0 : index
    %c0_83 = arith.constant 0 : index
    %191 = vector.load %arg22[%c0_82, %c0_83] : memref<8x32xf32, #tpu.memory_space<vmem>>, vector<8x32xf32>
    tpu.vector_store %arg22[%c0_82, %c0_83], %190 {strides = array<i32>} : memref<8x32xf32, #tpu.memory_space<vmem>>, vector<8x32xf32>,
    %c1_i32 = arith.constant 1 : i32
    %192 = arith.cmpi eq, %arg1, %c1_i32 : i32
    %193 = arith.extui %192 : i1 to i32
    %c0_i32_84 = arith.constant 0 : i32
    %194 = arith.cmpi ne, %193, %c0_i32_84 : i32
    scf.if %194 {
      %195 = arith.index_cast %arg0 : i32 to index
      %196 = memref.load %arg2[%195] : memref<2xi32, #tpu.memory_space<smem>>
      %197 = tpu.iota {dimensions = array<i32: 0>} : vector<8x1xi32>
      %198 = vector.broadcast %196 : i32 to vector<8x1xi32>
      %199 = arith.cmpi eq, %197, %198 : vector<8x1xi32>
      %200 = arith.extui %199 : vector<8x1xi1> to vector<8x1xi32>
      %201 = arith.sitofp %200 : vector<8x1xi32> to vector<8x1xf32>
      %202 = vector.broadcast %201 : vector<8x1xf32> to vector<8x32xf32>
      %203 = arith.mulf %190, %202 : vector<8x32xf32>
      %cst_85 = arith.constant dense<0.000000e+00> : vector<32xf32>
      %204 = vector.multi_reduction <add>, %203, %cst_85 [0] : vector<8x32xf32> to vector<32xf32>
      %205 = vector.shape_cast %204 : vector<32xf32> to vector<1x32xf32>
      %c0_86 = arith.constant 0 : index
      %c0_87 = arith.constant 0 : index
      %206 = vector.load %arg18[%c0_86, %c0_87] : memref<1x32xf32, #tpu.memory_space<vmem>>, vector<1x32xf32>
      %c0_88 = arith.constant 0 : index
      %c0_89 = arith.constant 0 : index
      %207 = vector.load %arg19[%c0_88, %c0_89] : memref<1x32xf32, #tpu.memory_space<vmem>>, vector<1x32xf32>
      %cst_90 = arith.constant dense<0.000000e+00> : vector<1xf32>
      %208 = vector.multi_reduction <add>, %205, %cst_90 [1] : vector<1x32xf32> to vector<1xf32>
      %209 = vector.shape_cast %208 : vector<1xf32> to vector<1x1xf32>
      %cst_91 = arith.constant 3.200000e+01 : f32
      %210 = vector.broadcast %cst_91 : f32 to vector<1x1xf32>
      %211 = arith.divf %209, %210 : vector<1x1xf32>
      %212 = vector.broadcast %211 : vector<1x1xf32> to vector<1x32xf32>
      %213 = arith.subf %205, %212 : vector<1x32xf32>
      %214 = arith.mulf %213, %213 : vector<1x32xf32>
      %cst_92 = arith.constant dense<0.000000e+00> : vector<1xf32>
      %215 = vector.multi_reduction <add>, %214, %cst_92 [1] : vector<1x32xf32> to vector<1xf32>
      %216 = vector.shape_cast %215 : vector<1xf32> to vector<1x1xf32>
      %cst_93 = arith.constant 3.200000e+01 : f32
      %217 = vector.broadcast %cst_93 : f32 to vector<1x1xf32>
      %218 = arith.divf %216, %217 : vector<1x1xf32>
      %219 = vector.broadcast %211 : vector<1x1xf32> to vector<1x32xf32>
      %220 = arith.subf %205, %219 : vector<1x32xf32>
      %cst_94 = arith.constant 9.99999974E-6 : f32
      %221 = vector.broadcast %cst_94 : f32 to vector<1x1xf32>
      %222 = arith.addf %218, %221 : vector<1x1xf32>
      %223 = math.rsqrt %222 : vector<1x1xf32>
      %224 = vector.broadcast %223 : vector<1x1xf32> to vector<1x32xf32>
      %225 = arith.mulf %220, %224 : vector<1x32xf32>
      %226 = arith.mulf %225, %206 : vector<1x32xf32>
      %227 = arith.addf %226, %207 : vector<1x32xf32>
      %228 = arith.truncf %227 : vector<1x32xf32> to vector<1x32xbf16>
      %c0_95 = arith.constant 0 : index
      %c0_96 = arith.constant 0 : index
      %229 = vector.load %arg20[%c0_95, %c0_96] : memref<32x32xbf16, #tpu.memory_space<vmem>>, vector<32x32xbf16>
      %cst_97 = arith.constant dense<0.000000e+00> : vector<1x32xf32>
      %230 = tpu.matmul %228, %229, %cst_97 {dimension_numbers = #tpu.dot_dimension_numbers<[1], [0], [0], [1], [0, 0, 1, 1], [], []>} : vector<1x32xbf16>, vector<32x32xbf16>, vector<1x32xf32> -> vector<1x32xf32>
      %c0_98 = arith.constant 0 : index
      %c0_99 = arith.constant 0 : index
      %c0_100 = arith.constant 0 : index
      %231 = vector.load %arg21[%c0_98, %c0_99, %c0_100] : memref<1x1x32xf32, #tpu.memory_space<vmem>>, vector<1x1x32xf32>
      %232 = vector.shape_cast %231 : vector<1x1x32xf32> to vector<1x32xf32>
      %233 = vector.shape_cast %230 : vector<1x32xf32> to vector<1x1x32xf32>
      tpu.vector_store %arg21[%c0_98, %c0_99, %c0_100], %233 {strides = array<i32>} : memref<1x1x32xf32, #tpu.memory_space<vmem>>, vector<1x1x32xf32>,
    } else {
    }
    return
  }
  func.func @transform_0(%arg0: i32, %arg1: i32, %arg2: memref<2xi32, #tpu.memory_space<smem>>) -> (i32, i32, i32) {
    %c0_i32 = arith.constant 0 : i32
    %c0_i32_0 = arith.constant 0 : i32
    %c0_i32_1 = arith.constant 0 : i32
    return %arg0, %c0_i32, %c0_i32_0 : i32, i32, i32
  }
  func.func @transform_1(%arg0: i32, %arg1: i32, %arg2: memref<2xi32, #tpu.memory_space<smem>>) -> (i32, i32) {
    %c0_i32 = arith.constant 0 : i32
    %c0_i32_0 = arith.constant 0 : i32
    %c0_i32_1 = arith.constant 0 : i32
    return %c0_i32, %c0_i32_0 : i32, i32
  }
  func.func @transform_2(%arg0: i32, %arg1: i32, %arg2: memref<2xi32, #tpu.memory_space<smem>>) -> (i32, i32) {
    %c0_i32 = arith.constant 0 : i32
    %c0_i32_0 = arith.constant 0 : i32
    %c0_i32_1 = arith.constant 0 : i32
    return %c0_i32, %c0_i32_0 : i32, i32
  }
  func.func @transform_3(%arg0: i32, %arg1: i32, %arg2: memref<2xi32, #tpu.memory_space<smem>>) -> (i32, i32, i32) {
    %c0_i32 = arith.constant 0 : i32
    %c0_i32_0 = arith.constant 0 : i32
    %c0_i32_1 = arith.constant 0 : i32
    return %arg1, %c0_i32, %c0_i32_0 : i32, i32, i32
  }
  func.func @transform_4(%arg0: i32, %arg1: i32, %arg2: memref<2xi32, #tpu.memory_space<smem>>) -> (i32, i32, i32) {
    %c0_i32 = arith.constant 0 : i32
    %c0_i32_0 = arith.constant 0 : i32
    %c0_i32_1 = arith.constant 0 : i32
    return %arg1, %c0_i32, %c0_i32_0 : i32, i32, i32
  }
  func.func @transform_5(%arg0: i32, %arg1: i32, %arg2: memref<2xi32, #tpu.memory_space<smem>>) -> (i32, i32, i32) {
    %c0_i32 = arith.constant 0 : i32
    %c0_i32_0 = arith.constant 0 : i32
    %c0_i32_1 = arith.constant 0 : i32
    return %arg1, %c0_i32, %c0_i32_0 : i32, i32, i32
  }
  func.func @transform_6(%arg0: i32, %arg1: i32, %arg2: memref<2xi32, #tpu.memory_space<smem>>) -> (i32, i32, i32) {
    %c0_i32 = arith.constant 0 : i32
    %c0_i32_0 = arith.constant 0 : i32
    %c0_i32_1 = arith.constant 0 : i32
    return %arg1, %c0_i32, %c0_i32_0 : i32, i32, i32
  }
  func.func @transform_7(%arg0: i32, %arg1: i32, %arg2: memref<2xi32, #tpu.memory_space<smem>>) -> (i32, i32, i32) {
    %c0_i32 = arith.constant 0 : i32
    %c0_i32_0 = arith.constant 0 : i32
    %c0_i32_1 = arith.constant 0 : i32
    return %arg1, %c0_i32, %c0_i32_0 : i32, i32, i32
  }
  func.func @transform_8(%arg0: i32, %arg1: i32, %arg2: memref<2xi32, #tpu.memory_space<smem>>) -> (i32, i32, i32) {
    %c0_i32 = arith.constant 0 : i32
    %c0_i32_0 = arith.constant 0 : i32
    %c0_i32_1 = arith.constant 0 : i32
    return %arg1, %c0_i32, %c0_i32_0 : i32, i32, i32
  }
  func.func @transform_9(%arg0: i32, %arg1: i32, %arg2: memref<2xi32, #tpu.memory_space<smem>>) -> (i32, i32, i32) {
    %c0_i32 = arith.constant 0 : i32
    %c0_i32_0 = arith.constant 0 : i32
    %c0_i32_1 = arith.constant 0 : i32
    return %arg1, %c0_i32, %c0_i32_0 : i32, i32, i32
  }
  func.func @transform_10(%arg0: i32, %arg1: i32, %arg2: memref<2xi32, #tpu.memory_space<smem>>) -> (i32, i32, i32) {
    %c0_i32 = arith.constant 0 : i32
    %c0_i32_0 = arith.constant 0 : i32
    %c0_i32_1 = arith.constant 0 : i32
    return %arg1, %c0_i32, %c0_i32_0 : i32, i32, i32
  }
  func.func @transform_11(%arg0: i32, %arg1: i32, %arg2: memref<2xi32, #tpu.memory_space<smem>>) -> (i32, i32, i32) {
    %c0_i32 = arith.constant 0 : i32
    %c0_i32_0 = arith.constant 0 : i32
    %c0_i32_1 = arith.constant 0 : i32
    return %arg1, %c0_i32, %c0_i32_0 : i32, i32, i32
  }
  func.func @transform_12(%arg0: i32, %arg1: i32, %arg2: memref<2xi32, #tpu.memory_space<smem>>) -> (i32, i32, i32) {
    %c0_i32 = arith.constant 0 : i32
    %c0_i32_0 = arith.constant 0 : i32
    %c0_i32_1 = arith.constant 0 : i32
    return %arg1, %c0_i32, %c0_i32_0 : i32, i32, i32
  }
  func.func @transform_13(%arg0: i32, %arg1: i32, %arg2: memref<2xi32, #tpu.memory_space<smem>>) -> (i32, i32, i32) {
    %c0_i32 = arith.constant 0 : i32
    %c0_i32_0 = arith.constant 0 : i32
    %c0_i32_1 = arith.constant 0 : i32
    return %arg1, %c0_i32, %c0_i32_0 : i32, i32, i32
  }
  func.func @transform_14(%arg0: i32, %arg1: i32, %arg2: memref<2xi32, #tpu.memory_space<smem>>) -> (i32, i32, i32) {
    %c0_i32 = arith.constant 0 : i32
    %c0_i32_0 = arith.constant 0 : i32
    %c0_i32_1 = arith.constant 0 : i32
    return %arg1, %c0_i32, %c0_i32_0 : i32, i32, i32
  }
  func.func @transform_15(%arg0: i32, %arg1: i32, %arg2: memref<2xi32, #tpu.memory_space<smem>>) -> (i32, i32) {
    %c0_i32 = arith.constant 0 : i32
    %c0_i32_0 = arith.constant 0 : i32
    %c0_i32_1 = arith.constant 0 : i32
    return %c0_i32, %c0_i32_0 : i32, i32
  }
  func.func @transform_16(%arg0: i32, %arg1: i32, %arg2: memref<2xi32, #tpu.memory_space<smem>>) -> (i32, i32) {
    %c0_i32 = arith.constant 0 : i32
    %c0_i32_0 = arith.constant 0 : i32
    %c0_i32_1 = arith.constant 0 : i32
    return %c0_i32, %c0_i32_0 : i32, i32
  }
  func.func @transform_17(%arg0: i32, %arg1: i32, %arg2: memref<2xi32, #tpu.memory_space<smem>>) -> (i32, i32) {
    %c0_i32 = arith.constant 0 : i32
    %c0_i32_0 = arith.constant 0 : i32
    %c0_i32_1 = arith.constant 0 : i32
    return %c0_i32, %c0_i32_0 : i32, i32
  }
  func.func @transform_18(%arg0: i32, %arg1: i32, %arg2: memref<2xi32, #tpu.memory_space<smem>>) -> (i32, i32, i32) {
    %c0_i32 = arith.constant 0 : i32
    %c0_i32_0 = arith.constant 0 : i32
    %c0_i32_1 = arith.constant 0 : i32
    return %arg0, %c0_i32, %c0_i32_0 : i32, i32, i32
  }
}

</mosaic_0001>

<llo_original>
// kernel: tpu_custom_call.1
$region0: #{tpu_custom_call.1}
  #allocation0 [shape = 'u32[]', space=smem, size = 0x4, offset = 0x4, fixed_abs, tag = 'smem constant byte address 0x4 - core index']
  #allocation1 [shape = 'u32[144,128]{1,0:T(1,128)}', space=vmem, size = 0x12000, scoped, tag = 'internal scratch']
  #allocation2 [shape = 'f32[8,32]{1,0:T(8,128)}', space=vmem, size = 0x1000, scoped, tag = 'scratch operand']
  #allocation3 [shape = 's32[1]{0}', space=sflag, size = 0x4, scoped, tag = 'scoped memory for tpu_custom_call.1']
  #allocation4 [shape = 'u8[512]{0}', space=smem, size = 0x200, scoped, tag = 'prefetched SMEM operand 0']
  %s0 = inlined_call_operand.hbm [shape: s32[2], index: 0, kind: input, shape index: {}]
  %s1 = inlined_call_operand.vmem [shape: f32[2,8,32], index: 1, kind: input, shape index: {}]
  %s2 = inlined_call_operand.vmem [shape: f32[8,32], index: 2, kind: input, shape index: {}]
  %s3 = inlined_call_operand.vmem [shape: f32[8,8], index: 3, kind: input, shape index: {}]
  %s4 = inlined_call_operand.vmem [shape: f32[2,1,32], index: 4, kind: input, shape index: {}]
  %s5 = inlined_call_operand.vmem [shape: f32[2,1,32], index: 5, kind: input, shape index: {}]
  %s6 = inlined_call_operand.vmem [shape: bf16[2,32,96], index: 6, kind: input, shape index: {}]
  %s7 = inlined_call_operand.vmem [shape: f32[2,1,96], index: 7, kind: input, shape index: {}]
  %s8 = inlined_call_operand.vmem [shape: bf16[2,32,32], index: 8, kind: input, shape index: {}]
  %s9 = inlined_call_operand.vmem [shape: f32[2,1,32], index: 9, kind: input, shape index: {}]
  %s10 = inlined_call_operand.vmem [shape: f32[2,1,32], index: 10, kind: input, shape index: {}]
  %s11 = inlined_call_operand.vmem [shape: f32[2,1,32], index: 11, kind: input, shape index: {}]
  %s12 = inlined_call_operand.vmem [shape: bf16[2,32,128], index: 12, kind: input, shape index: {}]
  %s13 = inlined_call_operand.vmem [shape: f32[2,1,128], index: 13, kind: input, shape index: {}]
  %s14 = inlined_call_operand.vmem [shape: bf16[2,128,32], index: 14, kind: input, shape index: {}]
  %s15 = inlined_call_operand.vmem [shape: f32[2,1,32], index: 15, kind: input, shape index: {}]
  %s16 = inlined_call_operand.vmem [shape: f32[1,32], index: 16, kind: input, shape index: {}]
  %s17 = inlined_call_operand.vmem [shape: f32[1,32], index: 17, kind: input, shape index: {}]
  %s18 = inlined_call_operand.vmem [shape: bf16[32,32], index: 18, kind: input, shape index: {}]
  %s19 = inlined_call_operand.hbm [shape: f32[2,1,32], index: 19, kind: output, shape index: {}]
  %s20 = sld [smem:[#allocation0]]
  $region113: #{tpu_custom_call.1} parent=0
    _
  %s22 = ssub.s32 1, %s20
  %s23 = scalar_select 0, %s22, %s20
  %25 = dma.hbm_to_smem %s0, 16, [#allocation4], [#allocation3]
  %26 = dma.done [#allocation3], 16
  %27 = sfence
  $region1: #{tpu_custom_call.1} parent=0
    #allocation5 [shape = 'u8[1024]{0}', space=vmem, size = 0x400, scoped, tag = 'output window, operand 0']
    #allocation6 [shape = 's32[2]{0}', space=sflag, size = 0x8, scoped, tag = 'scoped memory for tpu_custom_call.1']
    %28 = vsyncpa [#allocation6], 0
    %s29 = scalar_lea.sflag [#allocation6], 1
    %30 = vsyncpa %s29, 0
    loop: start=0, step=1, limit=6
    $region2: #{tpu_custom_call.1} parent=1 // loop_pre_header
      _
    $region3: #{tpu_custom_call.1} parent=1 // loop_header
      %s32 = sphi 0, %s36
      %p33 = scmp.ge.s32.totalorder %s32, 6
      %s39 = sphi 0, %s51
      %s40 = sphi 0, %s47
      %s41 = sphi 0, %s39
      %s42 = sphi 0, %s40
      %s43 = sphi 0, %s41
      %s44 = sphi 0, %s42
      %s54 = sphi 0, %s56
      %s57 = sphi 0, %s54
      %s58 = sphi 0, %s57
      %s74 = sphi 0, %s58
      %s78 = sphi 0, %s78
      %s80 = sphi 0, %s78
      %s81 = sphi 0, %s80
      %s95 = sphi 0, %s81
      %s99 = sphi 0, %s99
      %s101 = sphi 0, %s99
      %s102 = sphi 0, %s101
      %s116 = sphi 0, %s102
      %s122 = sphi 0, %s124
      %s125 = sphi 0, %s122
      %s126 = sphi 0, %s125
      %s142 = sphi 0, %s126
      %s148 = sphi 0, %s150
      %s151 = sphi 0, %s148
      %s152 = sphi 0, %s151
      %s168 = sphi 0, %s152
      %s174 = sphi 0, %s176
      %s177 = sphi 0, %s174
      %s178 = sphi 0, %s177
      %s194 = sphi 0, %s178
      %s200 = sphi 0, %s202
      %s203 = sphi 0, %s200
      %s204 = sphi 0, %s203
      %s220 = sphi 0, %s204
      %s226 = sphi 0, %s228
      %s229 = sphi 0, %s226
      %s230 = sphi 0, %s229
      %s246 = sphi 0, %s230
      %s252 = sphi 0, %s254
      %s255 = sphi 0, %s252
      %s256 = sphi 0, %s255
      %s272 = sphi 0, %s256
      %s278 = sphi 0, %s280
      %s281 = sphi 0, %s278
      %s282 = sphi 0, %s281
      %s298 = sphi 0, %s282
      %s304 = sphi 0, %s306
      %s307 = sphi 0, %s304
      %s308 = sphi 0, %s307
      %s324 = sphi 0, %s308
      %s330 = sphi 0, %s332
      %s333 = sphi 0, %s330
      %s334 = sphi 0, %s333
      %s350 = sphi 0, %s334
      %s356 = sphi 0, %s358
      %s359 = sphi 0, %s356
      %s360 = sphi 0, %s359
      %s376 = sphi 0, %s360
      %s382 = sphi 0, %s384
      %s385 = sphi 0, %s382
      %s386 = sphi 0, %s385
      %s402 = sphi 0, %s386
      %s408 = sphi 0, %s410
      %s411 = sphi 0, %s408
      %s412 = sphi 0, %s411
      %s428 = sphi 0, %s412
      %s432 = sphi 0, %s432
      %s434 = sphi 0, %s432
      %s435 = sphi 0, %s434
      %s449 = sphi 0, %s435
      %s453 = sphi 0, %s453
      %s455 = sphi 0, %s453
      %s456 = sphi 0, %s455
      %s470 = sphi 0, %s456
      %s474 = sphi 0, %s474
      %s476 = sphi 0, %s474
      %s477 = sphi 0, %s476
      %s491 = sphi 0, %s477
      %s497 = sphi 0, %s499
      %s500 = sphi 0, %s497
      %s501 = sphi 0, %s500
      %s517 = sphi 0, %s501
    $region4: #{tpu_custom_call.1} parent=1 // loop_header_branch
      %35 = sbr.rel (%p33) target = $region8
    $region5: #{tpu_custom_call.1} parent=1 // loop_body
      %s37 = ssub.s32 %s32, 1
      %s38 = ssub.s32 %s32, 2
      %s45 = sadd.s32 1, %s40
      %p46 = scmp.ge.s32.totalorder %s45, 2
      %s47 = scalar_select %p46, 0, %s45
      %s48 = sadd.s32 1, %s39
      %s49 = scalar_select %p46, %s48, %s39
      %p50 = scmp.ge.s32.totalorder %s49, 2
      %s51 = scalar_select %p50, 0, %s49
      %s52 = ssub.s32 %s39, %s51
      %p53 = scmp.eq.s32.totalorder %s52, 0
      %s55 = sadd.s32 %s54, 1
      %s56 = scalar_select %p53, %s54, %s55
      %p59 = pneg %p53
      %p60 = scmp.eq.s32.totalorder %s32, 3
      %p61 = por %p59, %p60
      %p62 = scmp.ne.s32.totalorder %s54, %s57
      %p63 = scmp.eq.s32.totalorder %s32, 0
      %p64 = por %p62, %p63
      %p65 = scmp.ne.s32.totalorder %s54, %s57
      %p66 = scmp.eq.s32.totalorder %s37, 3
      %p67 = por %p65, %p66
      %p68 = scmp.ne.s32.totalorder %s57, %s58
      %p69 = scmp.eq.s32.totalorder %s37, 0
      %p70 = por %p68, %p69
      %p71 = scmp.ne.s32.totalorder %s57, %s58
      %p72 = scmp.eq.s32.totalorder %s38, 3
      %p73 = por %p71, %p72
      %p75 = scmp.ne.s32.totalorder %s58, %s74
      %p76 = scmp.eq.s32.totalorder %s38, 0
      %p77 = por %p75, %p76
      %s79 = sadd.s32 %s78, 1
      %p82 = scmp.eq.s32.totalorder %s32, 3
      %p83 = scmp.ne.s32.totalorder %s78, %s80
      %p84 = scmp.eq.s32.totalorder %s32, 0
      %p85 = por %p83, %p84
      %p86 = scmp.ne.s32.totalorder %s78, %s80
      %p87 = scmp.eq.s32.totalorder %s37, 3
      %p88 = por %p86, %p87
      %p89 = scmp.ne.s32.totalorder %s80, %s81
      %p90 = scmp.eq.s32.totalorder %s37, 0
      %p91 = por %p89, %p90
      %p92 = scmp.ne.s32.totalorder %s80, %s81
      %p93 = scmp.eq.s32.totalorder %s38, 3
      %p94 = por %p92, %p93
      %p96 = scmp.ne.s32.totalorder %s81, %s95
      %p97 = scmp.eq.s32.totalorder %s38, 0
      %p98 = por %p96, %p97
      %s100 = sadd.s32 %s99, 1
      %p103 = scmp.eq.s32.totalorder %s32, 3
      %p104 = scmp.ne.s32.totalorder %s99, %s101
      %p105 = scmp.eq.s32.totalorder %s32, 0
      %p106 = por %p104, %p105
      %p107 = scmp.ne.s32.totalorder %s99, %s101
      %p108 = scmp.eq.s32.totalorder %s37, 3
      %p109 = por %p107, %p108
      %p110 = scmp.ne.s32.totalorder %s101, %s102
      %p111 = scmp.eq.s32.totalorder %s37, 0
      %p112 = por %p110, %p111
      %p113 = scmp.ne.s32.totalorder %s101, %s102
      %p114 = scmp.eq.s32.totalorder %s38, 3
      %p115 = por %p113, %p114
      %p117 = scmp.ne.s32.totalorder %s102, %s116
      %p118 = scmp.eq.s32.totalorder %s38, 0
      %p119 = por %p117, %p118
      %s120 = ssub.s32 %s40, %s47
      %p121 = scmp.eq.s32.totalorder %s120, 0
      %s123 = sadd.s32 %s122, 1
      %s124 = scalar_select %p121, %s122, %s123
      %p127 = pneg %p121
      %p128 = scmp.eq.s32.totalorder %s32, 3
      %p129 = por %p127, %p128
      %p130 = scmp.ne.s32.totalorder %s122, %s125
      %p131 = scmp.eq.s32.totalorder %s32, 0
      %p132 = por %p130, %p131
      %p133 = scmp.ne.s32.totalorder %s122, %s125
      %p134 = scmp.eq.s32.totalorder %s37, 3
      %p135 = por %p133, %p134
      %p136 = scmp.ne.s32.totalorder %s125, %s126
      %p137 = scmp.eq.s32.totalorder %s37, 0
      %p138 = por %p136, %p137
      %p139 = scmp.ne.s32.totalorder %s125, %s126
      %p140 = scmp.eq.s32.totalorder %s38, 3
      %p141 = por %p139, %p140
      %p143 = scmp.ne.s32.totalorder %s126, %s142
      %p144 = scmp.eq.s32.totalorder %s38, 0
      %p145 = por %p143, %p144
      %s146 = ssub.s32 %s40, %s47
      %p147 = scmp.eq.s32.totalorder %s146, 0
      %s149 = sadd.s32 %s148, 1
      %s150 = scalar_select %p147, %s148, %s149
      %p153 = pneg %p147
      %p154 = scmp.eq.s32.totalorder %s32, 3
      %p155 = por %p153, %p154
      %p156 = scmp.ne.s32.totalorder %s148, %s151
      %p157 = scmp.eq.s32.totalorder %s32, 0
      %p158 = por %p156, %p157
      %p159 = scmp.ne.s32.totalorder %s148, %s151
      %p160 = scmp.eq.s32.totalorder %s37, 3
      %p161 = por %p159, %p160
      %p162 = scmp.ne.s32.totalorder %s151, %s152
      %p163 = scmp.eq.s32.totalorder %s37, 0
      %p164 = por %p162, %p163
      %p165 = scmp.ne.s32.totalorder %s151, %s152
      %p166 = scmp.eq.s32.totalorder %s38, 3
      %p167 = por %p165, %p166
      %p169 = scmp.ne.s32.totalorder %s152, %s168
      %p170 = scmp.eq.s32.totalorder %s38, 0
      %p171 = por %p169, %p170
      %s172 = ssub.s32 %s40, %s47
      %p173 = scmp.eq.s32.totalorder %s172, 0
      %s175 = sadd.s32 %s174, 1
      %s176 = scalar_select %p173, %s174, %s175
      %p179 = pneg %p173
      %p180 = scmp.eq.s32.totalorder %s32, 3
      %p181 = por %p179, %p180
      %p182 = scmp.ne.s32.totalorder %s174, %s177
      %p183 = scmp.eq.s32.totalorder %s32, 0
      %p184 = por %p182, %p183
      %p185 = scmp.ne.s32.totalorder %s174, %s177
      %p186 = scmp.eq.s32.totalorder %s37, 3
      %p187 = por %p185, %p186
      %p188 = scmp.ne.s32.totalorder %s177, %s178
      %p189 = scmp.eq.s32.totalorder %s37, 0
      %p190 = por %p188, %p189
      %p191 = scmp.ne.s32.totalorder %s177, %s178
      %p192 = scmp.eq.s32.totalorder %s38, 3
      %p193 = por %p191, %p192
      %p195 = scmp.ne.s32.totalorder %s178, %s194
      %p196 = scmp.eq.s32.totalorder %s38, 0
      %p197 = por %p195, %p196
      %s198 = ssub.s32 %s40, %s47
      %p199 = scmp.eq.s32.totalorder %s198, 0
      %s201 = sadd.s32 %s200, 1
      %s202 = scalar_select %p199, %s200, %s201
      %p205 = pneg %p199
      %p206 = scmp.eq.s32.totalorder %s32, 3
      %p207 = por %p205, %p206
      %p208 = scmp.ne.s32.totalorder %s200, %s203
      %p209 = scmp.eq.s32.totalorder %s32, 0
      %p210 = por %p208, %p209
      %p211 = scmp.ne.s32.totalorder %s200, %s203
      %p212 = scmp.eq.s32.totalorder %s37, 3
      %p213 = por %p211, %p212
      %p214 = scmp.ne.s32.totalorder %s203, %s204
      %p215 = scmp.eq.s32.totalorder %s37, 0
      %p216 = por %p214, %p215
      %p217 = scmp.ne.s32.totalorder %s203, %s204
      %p218 = scmp.eq.s32.totalorder %s38, 3
      %p219 = por %p217, %p218
      %p221 = scmp.ne.s32.totalorder %s204, %s220
      %p222 = scmp.eq.s32.totalorder %s38, 0
      %p223 = por %p221, %p222
      %s224 = ssub.s32 %s40, %s47
      %p225 = scmp.eq.s32.totalorder %s224, 0
      %s227 = sadd.s32 %s226, 1
      %s228 = scalar_select %p225, %s226, %s227
      %p231 = pneg %p225
      %p232 = scmp.eq.s32.totalorder %s32, 3
      %p233 = por %p231, %p232
      %p234 = scmp.ne.s32.totalorder %s226, %s229
      %p235 = scmp.eq.s32.totalorder %s32, 0
      %p236 = por %p234, %p235
      %p237 = scmp.ne.s32.totalorder %s226, %s229
      %p238 = scmp.eq.s32.totalorder %s37, 3
      %p239 = por %p237, %p238
      %p240 = scmp.ne.s32.totalorder %s229, %s230
      %p241 = scmp.eq.s32.totalorder %s37, 0
      %p242 = por %p240, %p241
      %p243 = scmp.ne.s32.totalorder %s229, %s230
      %p244 = scmp.eq.s32.totalorder %s38, 3
      %p245 = por %p243, %p244
      %p247 = scmp.ne.s32.totalorder %s230, %s246
      %p248 = scmp.eq.s32.totalorder %s38, 0
      %p249 = por %p247, %p248
      %s250 = ssub.s32 %s40, %s47
      %p251 = scmp.eq.s32.totalorder %s250, 0
      %s253 = sadd.s32 %s252, 1
      %s254 = scalar_select %p251, %s252, %s253
      %p257 = pneg %p251
      %p258 = scmp.eq.s32.totalorder %s32, 3
      %p259 = por %p257, %p258
      %p260 = scmp.ne.s32.totalorder %s252, %s255
      %p261 = scmp.eq.s32.totalorder %s32, 0
      %p262 = por %p260, %p261
      %p263 = scmp.ne.s32.totalorder %s252, %s255
      %p264 = scmp.eq.s32.totalorder %s37, 3
      %p265 = por %p263, %p264
      %p266 = scmp.ne.s32.totalorder %s255, %s256
      %p267 = scmp.eq.s32.totalorder %s37, 0
      %p268 = por %p266, %p267
      %p269 = scmp.ne.s32.totalorder %s255, %s256
      %p270 = scmp.eq.s32.totalorder %s38, 3
      %p271 = por %p269, %p270
      %p273 = scmp.ne.s32.totalorder %s256, %s272
      %p274 = scmp.eq.s32.totalorder %s38, 0
      %p275 = por %p273, %p274
      %s276 = ssub.s32 %s40, %s47
      %p277 = scmp.eq.s32.totalorder %s276, 0
      %s279 = sadd.s32 %s278, 1
      %s280 = scalar_select %p277, %s278, %s279
      %p283 = pneg %p277
      %p284 = scmp.eq.s32.totalorder %s32, 3
      %p285 = por %p283, %p284
      %p286 = scmp.ne.s32.totalorder %s278, %s281
      %p287 = scmp.eq.s32.totalorder %s32, 0
      %p288 = por %p286, %p287
      %p289 = scmp.ne.s32.totalorder %s278, %s281
      %p290 = scmp.eq.s32.totalorder %s37, 3
      %p291 = por %p289, %p290
      %p292 = scmp.ne.s32.totalorder %s281, %s282
      %p293 = scmp.eq.s32.totalorder %s37, 0
      %p294 = por %p292, %p293
      %p295 = scmp.ne.s32.totalorder %s281, %s282
      %p296 = scmp.eq.s32.totalorder %s38, 3
      %p297 = por %p295, %p296
      %p299 = scmp.ne.s32.totalorder %s282, %s298
      %p300 = scmp.eq.s32.totalorder %s38, 0
      %p301 = por %p299, %p300
      %s302 = ssub.s32 %s40, %s47
      %p303 = scmp.eq.s32.totalorder %s302, 0
      %s305 = sadd.s32 %s304, 1
      %s306 = scalar_select %p303, %s304, %s305
      %p309 = pneg %p303
      %p310 = scmp.eq.s32.totalorder %s32, 3
      %p311 = por %p309, %p310
      %p312 = scmp.ne.s32.totalorder %s304, %s307
      %p313 = scmp.eq.s32.totalorder %s32, 0
      %p314 = por %p312, %p313
      %p315 = scmp.ne.s32.totalorder %s304, %s307
      %p316 = scmp.eq.s32.totalorder %s37, 3
      %p317 = por %p315, %p316
      %p318 = scmp.ne.s32.totalorder %s307, %s308
      %p319 = scmp.eq.s32.totalorder %s37, 0
      %p320 = por %p318, %p319
      %p321 = scmp.ne.s32.totalorder %s307, %s308
      %p322 = scmp.eq.s32.totalorder %s38, 3
      %p323 = por %p321, %p322
      %p325 = scmp.ne.s32.totalorder %s308, %s324
      %p326 = scmp.eq.s32.totalorder %s38, 0
      %p327 = por %p325, %p326
      %s328 = ssub.s32 %s40, %s47
      %p329 = scmp.eq.s32.totalorder %s328, 0
      %s331 = sadd.s32 %s330, 1
      %s332 = scalar_select %p329, %s330, %s331
      %p335 = pneg %p329
      %p336 = scmp.eq.s32.totalorder %s32, 3
      %p337 = por %p335, %p336
      %p338 = scmp.ne.s32.totalorder %s330, %s333
      %p339 = scmp.eq.s32.totalorder %s32, 0
      %p340 = por %p338, %p339
      %p341 = scmp.ne.s32.totalorder %s330, %s333
      %p342 = scmp.eq.s32.totalorder %s37, 3
      %p343 = por %p341, %p342
      %p344 = scmp.ne.s32.totalorder %s333, %s334
      %p345 = scmp.eq.s32.totalorder %s37, 0
      %p346 = por %p344, %p345
      %p347 = scmp.ne.s32.totalorder %s333, %s334
      %p348 = scmp.eq.s32.totalorder %s38, 3
      %p349 = por %p347, %p348
      %p351 = scmp.ne.s32.totalorder %s334, %s350
      %p352 = scmp.eq.s32.totalorder %s38, 0
      %p353 = por %p351, %p352
      %s354 = ssub.s32 %s40, %s47
      %p355 = scmp.eq.s32.totalorder %s354, 0
      %s357 = sadd.s32 %s356, 1
      %s358 = scalar_select %p355, %s356, %s357
      %p361 = pneg %p355
      %p362 = scmp.eq.s32.totalorder %s32, 3
      %p363 = por %p361, %p362
      %p364 = scmp.ne.s32.totalorder %s356, %s359
      %p365 = scmp.eq.s32.totalorder %s32, 0
      %p366 = por %p364, %p365
      %p367 = scmp.ne.s32.totalorder %s356, %s359
      %p368 = scmp.eq.s32.totalorder %s37, 3
      %p369 = por %p367, %p368
      %p370 = scmp.ne.s32.totalorder %s359, %s360
      %p371 = scmp.eq.s32.totalorder %s37, 0
      %p372 = por %p370, %p371
      %p373 = scmp.ne.s32.totalorder %s359, %s360
      %p374 = scmp.eq.s32.totalorder %s38, 3
      %p375 = por %p373, %p374
      %p377 = scmp.ne.s32.totalorder %s360, %s376
      %p378 = scmp.eq.s32.totalorder %s38, 0
      %p379 = por %p377, %p378
      %s380 = ssub.s32 %s40, %s47
      %p381 = scmp.eq.s32.totalorder %s380, 0
      %s383 = sadd.s32 %s382, 1
      %s384 = scalar_select %p381, %s382, %s383
      %p387 = pneg %p381
      %p388 = scmp.eq.s32.totalorder %s32, 3
      %p389 = por %p387, %p388
      %p390 = scmp.ne.s32.totalorder %s382, %s385
      %p391 = scmp.eq.s32.totalorder %s32, 0
      %p392 = por %p390, %p391
      %p393 = scmp.ne.s32.totalorder %s382, %s385
      %p394 = scmp.eq.s32.totalorder %s37, 3
      %p395 = por %p393, %p394
      %p396 = scmp.ne.s32.totalorder %s385, %s386
      %p397 = scmp.eq.s32.totalorder %s37, 0
      %p398 = por %p396, %p397
      %p399 = scmp.ne.s32.totalorder %s385, %s386
      %p400 = scmp.eq.s32.totalorder %s38, 3
      %p401 = por %p399, %p400
      %p403 = scmp.ne.s32.totalorder %s386, %s402
      %p404 = scmp.eq.s32.totalorder %s38, 0
      %p405 = por %p403, %p404
      %s406 = ssub.s32 %s40, %s47
      %p407 = scmp.eq.s32.totalorder %s406, 0
      %s409 = sadd.s32 %s408, 1
      %s410 = scalar_select %p407, %s408, %s409
      %p413 = pneg %p407
      %p414 = scmp.eq.s32.totalorder %s32, 3
      %p415 = por %p413, %p414
      %p416 = scmp.ne.s32.totalorder %s408, %s411
      %p417 = scmp.eq.s32.totalorder %s32, 0
      %p418 = por %p416, %p417
      %p419 = scmp.ne.s32.totalorder %s408, %s411
      %p420 = scmp.eq.s32.totalorder %s37, 3
      %p421 = por %p419, %p420
      %p422 = scmp.ne.s32.totalorder %s411, %s412
      %p423 = scmp.eq.s32.totalorder %s37, 0
      %p424 = por %p422, %p423
      %p425 = scmp.ne.s32.totalorder %s411, %s412
      %p426 = scmp.eq.s32.totalorder %s38, 3
      %p427 = por %p425, %p426
      %p429 = scmp.ne.s32.totalorder %s412, %s428
      %p430 = scmp.eq.s32.totalorder %s38, 0
      %p431 = por %p429, %p430
      %s433 = sadd.s32 %s432, 1
      %p436 = scmp.eq.s32.totalorder %s32, 3
      %p437 = scmp.ne.s32.totalorder %s432, %s434
      %p438 = scmp.eq.s32.totalorder %s32, 0
      %p439 = por %p437, %p438
      %p440 = scmp.ne.s32.totalorder %s432, %s434
      %p441 = scmp.eq.s32.totalorder %s37, 3
      %p442 = por %p440, %p441
      %p443 = scmp.ne.s32.totalorder %s434, %s435
      %p444 = scmp.eq.s32.totalorder %s37, 0
      %p445 = por %p443, %p444
      %p446 = scmp.ne.s32.totalorder %s434, %s435
      %p447 = scmp.eq.s32.totalorder %s38, 3
      %p448 = por %p446, %p447
      %p450 = scmp.ne.s32.totalorder %s435, %s449
      %p451 = scmp.eq.s32.totalorder %s38, 0
      %p452 = por %p450, %p451
      %s454 = sadd.s32 %s453, 1
      %p457 = scmp.eq.s32.totalorder %s32, 3
      %p458 = scmp.ne.s32.totalorder %s453, %s455
      %p459 = scmp.eq.s32.totalorder %s32, 0
      %p460 = por %p458, %p459
      %p461 = scmp.ne.s32.totalorder %s453, %s455
      %p462 = scmp.eq.s32.totalorder %s37, 3
      %p463 = por %p461, %p462
      %p464 = scmp.ne.s32.totalorder %s455, %s456
      %p465 = scmp.eq.s32.totalorder %s37, 0
      %p466 = por %p464, %p465
      %p467 = scmp.ne.s32.totalorder %s455, %s456
      %p468 = scmp.eq.s32.totalorder %s38, 3
      %p469 = por %p467, %p468
      %p471 = scmp.ne.s32.totalorder %s456, %s470
      %p472 = scmp.eq.s32.totalorder %s38, 0
      %p473 = por %p471, %p472
      %s475 = sadd.s32 %s474, 1
      %p478 = scmp.eq.s32.totalorder %s32, 3
      %p479 = scmp.ne.s32.totalorder %s474, %s476
      %p480 = scmp.eq.s32.totalorder %s32, 0
      %p481 = por %p479, %p480
      %p482 = scmp.ne.s32.totalorder %s474, %s476
      %p483 = scmp.eq.s32.totalorder %s37, 3
      %p484 = por %p482, %p483
      %p485 = scmp.ne.s32.totalorder %s476, %s477
      %p486 = scmp.eq.s32.totalorder %s37, 0
      %p487 = por %p485, %p486
      %p488 = scmp.ne.s32.totalorder %s476, %s477
      %p489 = scmp.eq.s32.totalorder %s38, 3
      %p490 = por %p488, %p489
      %p492 = scmp.ne.s32.totalorder %s477, %s491
      %p493 = scmp.eq.s32.totalorder %s38, 0
      %p494 = por %p492, %p493
      %s495 = ssub.s32 %s39, %s51
      %p496 = scmp.eq.s32.totalorder %s495, 0
      %s498 = sadd.s32 %s497, 1
      %s499 = scalar_select %p496, %s497, %s498
      %p502 = pneg %p496
      %p503 = scmp.eq.s32.totalorder %s32, 3
      %p504 = por %p502, %p503
      %p505 = scmp.ne.s32.totalorder %s497, %s500
      %p506 = scmp.eq.s32.totalorder %s32, 0
      %p507 = por %p505, %p506
      %p508 = scmp.ne.s32.totalorder %s497, %s500
      %p509 = scmp.eq.s32.totalorder %s37, 3
      %p510 = por %p508, %p509
      %p511 = scmp.ne.s32.totalorder %s500, %s501
      %p512 = scmp.eq.s32.totalorder %s37, 0
      %p513 = por %p511, %p512
      %p514 = scmp.ne.s32.totalorder %s500, %s501
      %p515 = scmp.eq.s32.totalorder %s38, 3
      %p516 = por %p514, %p515
      %p518 = scmp.ne.s32.totalorder %s501, %s517
      %p519 = scmp.eq.s32.totalorder %s38, 0
      %p520 = por %p518, %p519
      %p521 = scmp.le.s32.totalorder 1, %s32
      %p522 = scmp.lt.s32.totalorder %s32, 5
      %p523 = pnand %p521, %p522
      %p524 = pneg %p523
      // Predicated region
      $region9: #{tpu_custom_call.1} parent=5 // pred_check
        _
      $region10: #{tpu_custom_call.1} parent=5 // pred_check_branch
        %526 = sbr.rel (%p523) target = $region12
      $region11: #{tpu_custom_call.1} parent=5 // pred_region
        %s527 = ssub.s32 %s32, 1
        // Predicated region
        $region13: #{tpu_custom_call.1} parent=11 // pred_check
          %p528 = pneg %p91
        $region14: #{tpu_custom_call.1} parent=11 // pred_check_branch
          %530 = sbr.rel (%p528) target = $region16
        $region15: #{tpu_custom_call.1} parent=11 // pred_region
          _
        $region16: #{tpu_custom_call.1} parent=11 // pred_fallthru
          _
        // Predicated region
        $region17: #{tpu_custom_call.1} parent=11 // pred_check
          %p531 = pneg %p112
        $region18: #{tpu_custom_call.1} parent=11 // pred_check_branch
          %533 = sbr.rel (%p531) target = $region20
        $region19: #{tpu_custom_call.1} parent=11 // pred_region
          _
        $region20: #{tpu_custom_call.1} parent=11 // pred_fallthru
          _
        // Predicated region
        $region21: #{tpu_custom_call.1} parent=11 // pred_check
          %p534 = pneg %p445
        $region22: #{tpu_custom_call.1} parent=11 // pred_check_branch
          %536 = sbr.rel (%p534) target = $region24
        $region23: #{tpu_custom_call.1} parent=11 // pred_region
          _
        $region24: #{tpu_custom_call.1} parent=11 // pred_fallthru
          _
        // Predicated region
        $region25: #{tpu_custom_call.1} parent=11 // pred_check
          %p537 = pneg %p466
        $region26: #{tpu_custom_call.1} parent=11 // pred_check_branch
          %539 = sbr.rel (%p537) target = $region28
        $region27: #{tpu_custom_call.1} parent=11 // pred_region
          _
        $region28: #{tpu_custom_call.1} parent=11 // pred_fallthru
          _
        // Predicated region
        $region29: #{tpu_custom_call.1} parent=11 // pred_check
          %p540 = pneg %p487
        $region30: #{tpu_custom_call.1} parent=11 // pred_check_branch
          %542 = sbr.rel (%p540) target = $region32
        $region31: #{tpu_custom_call.1} parent=11 // pred_region
          _
        $region32: #{tpu_custom_call.1} parent=11 // pred_fallthru
          _
      $region12: #{tpu_custom_call.1} parent=5 // pred_fallthru
        _
      %p543 = scmp.lt.s32.totalorder %s32, 4
      // Predicated region
      $region33: #{tpu_custom_call.1} parent=5 // pred_check
        %p544 = pneg %p543
      $region34: #{tpu_custom_call.1} parent=5 // pred_check_branch
        %546 = sbr.rel (%p544) target = $region36
      $region35: #{tpu_custom_call.1} parent=5 // pred_region
        // Predicated region
        $region37: #{tpu_custom_call.1} parent=35 // pred_check
          %p547 = pneg %p64
        $region38: #{tpu_custom_call.1} parent=35 // pred_check_branch
          %549 = sbr.rel (%p547) target = $region40
        $region39: #{tpu_custom_call.1} parent=35 // pred_region
          %p550 = scmp.lt.s32.totalorder %s39, 1
          %s551 = scalar_select %p550, %s39, 1
          %s552 = smul.addr %s551, 8
          %s553 = scalar_lea.vmem %s1, %s552
        $region40: #{tpu_custom_call.1} parent=35 // pred_fallthru
          _
        // Predicated region
        $region41: #{tpu_custom_call.1} parent=35 // pred_check
          %p554 = pneg %p132
        $region42: #{tpu_custom_call.1} parent=35 // pred_check_branch
          %556 = sbr.rel (%p554) target = $region44
        $region43: #{tpu_custom_call.1} parent=35 // pred_region
          %p557 = scmp.lt.s32.totalorder %s40, 1
          %s558 = scalar_select %p557, %s40, 1
          %s559 = scalar_lea.vmem %s4, %s558
        $region44: #{tpu_custom_call.1} parent=35 // pred_fallthru
          _
        // Predicated region
        $region45: #{tpu_custom_call.1} parent=35 // pred_check
          %p560 = pneg %p158
        $region46: #{tpu_custom_call.1} parent=35 // pred_check_branch
          %562 = sbr.rel (%p560) target = $region48
        $region47: #{tpu_custom_call.1} parent=35 // pred_region
          %p563 = scmp.lt.s32.totalorder %s40, 1
          %s564 = scalar_select %p563, %s40, 1
          %s565 = scalar_lea.vmem %s5, %s564
        $region48: #{tpu_custom_call.1} parent=35 // pred_fallthru
          _
        // Predicated region
        $region49: #{tpu_custom_call.1} parent=35 // pred_check
          %p566 = pneg %p184
        $region50: #{tpu_custom_call.1} parent=35 // pred_check_branch
          %568 = sbr.rel (%p566) target = $region52
        $region51: #{tpu_custom_call.1} parent=35 // pred_region
          %p569 = scmp.lt.s32.totalorder %s40, 1
          %s570 = scalar_select %p569, %s40, 1
          %s571 = smul.addr %s570, 4
          %s572 = smul.addr %s571, 4
          %s573 = scalar_lea.vmem %s6, %s572
        $region52: #{tpu_custom_call.1} parent=35 // pred_fallthru
          _
        // Predicated region
        $region53: #{tpu_custom_call.1} parent=35 // pred_check
          %p574 = pneg %p210
        $region54: #{tpu_custom_call.1} parent=35 // pred_check_branch
          %576 = sbr.rel (%p574) target = $region56
        $region55: #{tpu_custom_call.1} parent=35 // pred_region
          %p577 = scmp.lt.s32.totalorder %s40, 1
          %s578 = scalar_select %p577, %s40, 1
          %s579 = scalar_lea.vmem %s7, %s578
        $region56: #{tpu_custom_call.1} parent=35 // pred_fallthru
          _
        // Predicated region
        $region57: #{tpu_custom_call.1} parent=35 // pred_check
          %p580 = pneg %p236
        $region58: #{tpu_custom_call.1} parent=35 // pred_check_branch
          %582 = sbr.rel (%p580) target = $region60
        $region59: #{tpu_custom_call.1} parent=35 // pred_region
          %p583 = scmp.lt.s32.totalorder %s40, 1
          %s584 = scalar_select %p583, %s40, 1
          %s585 = smul.addr %s584, 4
          %s586 = smul.addr %s585, 4
          %s587 = scalar_lea.vmem %s8, %s586
        $region60: #{tpu_custom_call.1} parent=35 // pred_fallthru
          _
        // Predicated region
        $region61: #{tpu_custom_call.1} parent=35 // pred_check
          %p588 = pneg %p262
        $region62: #{tpu_custom_call.1} parent=35 // pred_check_branch
          %590 = sbr.rel (%p588) target = $region64
        $region63: #{tpu_custom_call.1} parent=35 // pred_region
          %p591 = scmp.lt.s32.totalorder %s40, 1
          %s592 = scalar_select %p591, %s40, 1
          %s593 = scalar_lea.vmem %s9, %s592
        $region64: #{tpu_custom_call.1} parent=35 // pred_fallthru
          _
        // Predicated region
        $region65: #{tpu_custom_call.1} parent=35 // pred_check
          %p594 = pneg %p288
        $region66: #{tpu_custom_call.1} parent=35 // pred_check_branch
          %596 = sbr.rel (%p594) target = $region68
        $region67: #{tpu_custom_call.1} parent=35 // pred_region
          %p597 = scmp.lt.s32.totalorder %s40, 1
          %s598 = scalar_select %p597, %s40, 1
          %s599 = scalar_lea.vmem %s10, %s598
        $region68: #{tpu_custom_call.1} parent=35 // pred_fallthru
          _
        // Predicated region
        $region69: #{tpu_custom_call.1} parent=35 // pred_check
          %p600 = pneg %p314
        $region70: #{tpu_custom_call.1} parent=35 // pred_check_branch
          %602 = sbr.rel (%p600) target = $region72
        $region71: #{tpu_custom_call.1} parent=35 // pred_region
          %p603 = scmp.lt.s32.totalorder %s40, 1
          %s604 = scalar_select %p603, %s40, 1
          %s605 = scalar_lea.vmem %s11, %s604
        $region72: #{tpu_custom_call.1} parent=35 // pred_fallthru
          _
        // Predicated region
        $region73: #{tpu_custom_call.1} parent=35 // pred_check
          %p606 = pneg %p340
        $region74: #{tpu_custom_call.1} parent=35 // pred_check_branch
          %608 = sbr.rel (%p606) target = $region76
        $region75: #{tpu_custom_call.1} parent=35 // pred_region
          %p609 = scmp.lt.s32.totalorder %s40, 1
          %s610 = scalar_select %p609, %s40, 1
          %s611 = smul.addr %s610, 4
          %s612 = smul.addr %s611, 4
          %s613 = scalar_lea.vmem %s12, %s612
        $region76: #{tpu_custom_call.1} parent=35 // pred_fallthru
          _
        // Predicated region
        $region77: #{tpu_custom_call.1} parent=35 // pred_check
          %p614 = pneg %p366
        $region78: #{tpu_custom_call.1} parent=35 // pred_check_branch
          %616 = sbr.rel (%p614) target = $region80
        $region79: #{tpu_custom_call.1} parent=35 // pred_region
          %p617 = scmp.lt.s32.totalorder %s40, 1
          %s618 = scalar_select %p617, %s40, 1
          %s619 = scalar_lea.vmem %s13, %s618
        $region80: #{tpu_custom_call.1} parent=35 // pred_fallthru
          _
        // Predicated region
        $region81: #{tpu_custom_call.1} parent=35 // pred_check
          %p620 = pneg %p392
        $region82: #{tpu_custom_call.1} parent=35 // pred_check_branch
          %622 = sbr.rel (%p620) target = $region84
        $region83: #{tpu_custom_call.1} parent=35 // pred_region
          %p623 = scmp.lt.s32.totalorder %s40, 1
          %s624 = scalar_select %p623, %s40, 1
          %s625 = smul.addr %s624, 16
          %s626 = smul.addr %s625, 4
          %s627 = scalar_lea.vmem %s14, %s626
        $region84: #{tpu_custom_call.1} parent=35 // pred_fallthru
          _
        // Predicated region
        $region85: #{tpu_custom_call.1} parent=35 // pred_check
          %p628 = pneg %p418
        $region86: #{tpu_custom_call.1} parent=35 // pred_check_branch
          %630 = sbr.rel (%p628) target = $region88
        $region87: #{tpu_custom_call.1} parent=35 // pred_region
          %p631 = scmp.lt.s32.totalorder %s40, 1
          %s632 = scalar_select %p631, %s40, 1
          %s633 = scalar_lea.vmem %s15, %s632
        $region88: #{tpu_custom_call.1} parent=35 // pred_fallthru
          _
      $region36: #{tpu_custom_call.1} parent=5 // pred_fallthru
        _
      %p634 = scmp.le.s32.totalorder 1, %s32
      %p635 = scmp.lt.s32.totalorder %s32, 5
      %p636 = pnand %p634, %p635
      %p637 = pneg %p636
      // Predicated region
      $region89: #{tpu_custom_call.1} parent=5 // pred_check
        _
      $region90: #{tpu_custom_call.1} parent=5 // pred_check_branch
        %639 = sbr.rel (%p636) target = $region92
      $region91: #{tpu_custom_call.1} parent=5 // pred_region
        %s640 = ssub.s32 %s32, 1
        %p641 = scmp.lt.s32.totalorder %s41, 1
        %s642 = scalar_select %p641, %s41, 1
        %s643 = smul.addr %s642, 8
        %s644 = scalar_lea.vmem %s1, %s643
        %p645 = pneg %p70
        %p646 = pneg %p67
        %p647 = pneg %p91
        %p648 = pneg %p88
        %p649 = pneg %p112
        %p650 = pneg %p109
        %p651 = scmp.lt.s32.totalorder %s42, 1
        %s652 = scalar_select %p651, %s42, 1
        %s653 = scalar_lea.vmem %s4, %s652
        %p654 = pneg %p138
        %p655 = pneg %p135
        %p656 = scmp.lt.s32.totalorder %s42, 1
        %s657 = scalar_select %p656, %s42, 1
        %s658 = scalar_lea.vmem %s5, %s657
        %p659 = pneg %p164
        %p660 = pneg %p161
        %p661 = scmp.lt.s32.totalorder %s42, 1
        %s662 = scalar_select %p661, %s42, 1
        %s663 = smul.addr %s662, 4
        %s664 = smul.addr %s663, 4
        %s665 = scalar_lea.vmem %s6, %s664
        %p666 = pneg %p190
        %p667 = pneg %p187
        %p668 = scmp.lt.s32.totalorder %s42, 1
        %s669 = scalar_select %p668, %s42, 1
        %s670 = scalar_lea.vmem %s7, %s669
        %p671 = pneg %p216
        %p672 = pneg %p213
        %p673 = scmp.lt.s32.totalorder %s42, 1
        %s674 = scalar_select %p673, %s42, 1
        %s675 = smul.addr %s674, 4
        %s676 = smul.addr %s675, 4
        %s677 = scalar_lea.vmem %s8, %s676
        %p678 = pneg %p242
        %p679 = pneg %p239
        %p680 = scmp.lt.s32.totalorder %s42, 1
        %s681 = scalar_select %p680, %s42, 1
        %s682 = scalar_lea.vmem %s9, %s681
        %p683 = pneg %p268
        %p684 = pneg %p265
        %p685 = scmp.lt.s32.totalorder %s42, 1
        %s686 = scalar_select %p685, %s42, 1
        %s687 = scalar_lea.vmem %s10, %s686
        %p688 = pneg %p294
        %p689 = pneg %p291
        %p690 = scmp.lt.s32.totalorder %s42, 1
        %s691 = scalar_select %p690, %s42, 1
        %s692 = scalar_lea.vmem %s11, %s691
        %p693 = pneg %p320
        %p694 = pneg %p317
        %p695 = scmp.lt.s32.totalorder %s42, 1
        %s696 = scalar_select %p695, %s42, 1
        %s697 = smul.addr %s696, 4
        %s698 = smul.addr %s697, 4
        %s699 = scalar_lea.vmem %s12, %s698
        %p700 = pneg %p346
        %p701 = pneg %p343
        %p702 = scmp.lt.s32.totalorder %s42, 1
        %s703 = scalar_select %p702, %s42, 1
        %s704 = scalar_lea.vmem %s13, %s703
        %p705 = pneg %p372
        %p706 = pneg %p369
        %p707 = scmp.lt.s32.totalorder %s42, 1
        %s708 = scalar_select %p707, %s42, 1
        %s709 = smul.addr %s708, 16
        %s710 = smul.addr %s709, 4
        %s711 = scalar_lea.vmem %s14, %s710
        %p712 = pneg %p398
        %p713 = pneg %p395
        %p714 = scmp.lt.s32.totalorder %s42, 1
        %s715 = scalar_select %p714, %s42, 1
        %s716 = scalar_lea.vmem %s15, %s715
        %p717 = pneg %p424
        %p718 = pneg %p421
        %p719 = pneg %p445
        %p720 = pneg %p442
        %p721 = pneg %p466
        %p722 = pneg %p463
        %p723 = pneg %p487
        %p724 = pneg %p484
        %p725 = pneg %p513
        %p726 = pneg %p510
        %s727 = sand.u32 %s500, 1
        %s728 = scalar_lea.sflag [#allocation6], %s727
        %s729 = sand.u32 %s500, 1
        %s730 = scalar_lea.vmem [#allocation5], %s729
        %p731 = scmp.lt.s32.totalorder %s41, 1
        %s732 = scalar_select %p731, %s41, 1
        %s733 = smul.addr %s732, 8
        %s734 = scalar_lea.vmem %s1, %s733
        %p735 = scmp.lt.s32.totalorder %s42, 1
        %s736 = scalar_select %p735, %s42, 1
        %s737 = scalar_lea.vmem %s4, %s736
        %p738 = scmp.lt.s32.totalorder %s42, 1
        %s739 = scalar_select %p738, %s42, 1
        %s740 = scalar_lea.vmem %s5, %s739
        %p741 = scmp.lt.s32.totalorder %s42, 1
        %s742 = scalar_select %p741, %s42, 1
        %s743 = smul.addr %s742, 4
        %s744 = smul.addr %s743, 4
        %s745 = scalar_lea.vmem %s6, %s744
        %p746 = scmp.lt.s32.totalorder %s42, 1
        %s747 = scalar_select %p746, %s42, 1
        %s748 = scalar_lea.vmem %s7, %s747
        %p749 = scmp.lt.s32.totalorder %s42, 1
        %s750 = scalar_select %p749, %s42, 1
        %s751 = smul.addr %s750, 4
        %s752 = smul.addr %s751, 4
        %s753 = scalar_lea.vmem %s8, %s752
        %p754 = scmp.lt.s32.totalorder %s42, 1
        %s755 = scalar_select %p754, %s42, 1
        %s756 = scalar_lea.vmem %s9, %s755
        %p757 = scmp.lt.s32.totalorder %s42, 1
        %s758 = scalar_select %p757, %s42, 1
        %s759 = scalar_lea.vmem %s10, %s758
        %p760 = scmp.lt.s32.totalorder %s42, 1
        %s761 = scalar_select %p760, %s42, 1
        %s762 = scalar_lea.vmem %s11, %s761
        %p763 = scmp.lt.s32.totalorder %s42, 1
        %s764 = scalar_select %p763, %s42, 1
        %s765 = smul.addr %s764, 4
        %s766 = smul.addr %s765, 4
        %s767 = scalar_lea.vmem %s12, %s766
        %p768 = scmp.lt.s32.totalorder %s42, 1
        %s769 = scalar_select %p768, %s42, 1
        %s770 = scalar_lea.vmem %s13, %s769
        %p771 = scmp.lt.s32.totalorder %s42, 1
        %s772 = scalar_select %p771, %s42, 1
        %s773 = smul.addr %s772, 16
        %s774 = smul.addr %s773, 4
        %s775 = scalar_lea.vmem %s14, %s774
        %p776 = scmp.lt.s32.totalorder %s42, 1
        %s777 = scalar_select %p776, %s42, 1
        %s778 = scalar_lea.vmem %s15, %s777
        %p780 = scmp.eq.s32.totalorder %s42, 0
        // Predicated region
        $region93: #{tpu_custom_call.1} parent=91 // pred_check
          %p781 = pneg %p780
        $region94: #{tpu_custom_call.1} parent=91 // pred_check_branch
          %783 = sbr.rel (%p781) target = $region96
        $region95: #{tpu_custom_call.1} parent=91 // pred_region
          %v784 = vld [vmem:[%s734] sm:$0xff]
          %v785 = vld [vmem:[%s2] sm:$0xff]
          %v786 = vadd.f32 %v784, %v785
          %vm787 = vcmask 261120
          %788 = vst.msk [vmem:[#allocation2] sm:$0xff] %vm787, %v786
        $region96: #{tpu_custom_call.1} parent=91 // pred_fallthru
          _
        %v789 = vld [vmem:[#allocation2] sm:$0xff]
        %v790 = vld [vmem:[%s737] sm:$0x1]
        %v791 = vld [vmem:[%s740] sm:$0x1]
        %vm792 = vcmask 261120
        %v793 = vsel %vm792, %v789, 0.0
        %794 = vadd.xlane.f32.xlu0 %v793
        %v795 = vpop.xlane.xlu0 %794
        %v796 = vrcp.pop 32.0
        %v797 = vmul.f32 %v795, %v796
        %v798 = vsub.f32 %v789, %v797
        %v799 = vmul.f32 %v798, %v798
        %v800 = vsel %vm792, %v799, 0.0
        %801 = vadd.xlane.f32.xlu0 %v800
        %v802 = vpop.xlane.xlu0 %801
        %v803 = vmul.f32 %v802, %v796
        %v804 = vadd.f32 %v803, 1e-05
        %v805 = vrsqrt.pop %v804
        %v806 = vmul.f32 %v798, %v805
        %v808 = vlaneseq
        %v809 = vshrl.u32 %v808, 7
        %v810 = vsub.s32 0, %v809
        %v811 = vrot.slane %v790, %v810
        %v813 = vmul.f32 %v806, %v811
        %v815 = vlaneseq
        %v816 = vshrl.u32 %v815, 7
        %v817 = vsub.s32 0, %v816
        %v818 = vrot.slane %v791, %v817
        %v820 = vadd.f32 %v813, %v818
        %v821 = vpack.c.bf16 %v820, %v820
        %v822 = vld [vmem:[%s745] sm:$0xf]
        %v823 = vld [vmem:[%s745 + $0x4] sm:$0xf]
        %v824 = vld [vmem:[%s745 + $0x8] sm:$0xf]
        %v825 = vld [vmem:[%s745 + $0xc] sm:$0xf]
        %v826 = vld [vmem:[%s748] sm:$0x1]
        %v828 = vlaneseq
        %v829 = vshrl.u32 %v828, 7
        %v830 = vsub.s32 0, %v829
        %v831 = vrot.slane %v826, %v830
        %v837 = vunpack.c.l.b16 %v822
        %v838 = vunpack.c.l.b16 %v823
        %v839 = vunpack.c.l.b16 %v824
        %v840 = vunpack.c.l.b16 %v825
        %v841 = vpack.c.b16 %v838, %v837
        %v842 = vpack.c.b16 %v840, %v839
        %v846 = vsel %vm792, %v821, 0
        %848 = vmatprep.subr.bf16.mxu0 0
        %849 = vmatpush1.bf16.msra.mxu0 %v841
        %850 = vmatprep.subr.bf16.mxu0 0
        %851 = vmatpush1.bf16.msra.mxu0 %v842
        %852 = vmatprep.subr.bf16.mxu0 0
        %853 = vmatpush1.bf16.msra.mxu0 0
        %854 = vmatprep.subr.bf16.mxu0 0
        %855 = vmatpush1.bf16.msra.mxu0 0
        %856 = vmatprep.subr.bf16.mxu0 0
        %857 = vmatpush1.bf16.msra.mxu0 0
        %858 = vmatprep.subr.bf16.mxu0 0
        %859 = vmatpush1.bf16.msra.mxu0 0
        %860 = vmatprep.subr.bf16.mxu0 0
        %861 = vmatpush1.bf16.msra.mxu0 0
        %862 = vmatprep.subr.bf16.mxu0 0
        %863 = vmatpush1.bf16.msra.mxu0 0
        %864 = vmatprep.subr.bf16.mxu0 0
        %865 = vmatpush1.bf16.msra.mxu0 0
        %866 = vmatprep.subr.bf16.mxu0 0
        %867 = vmatpush1.bf16.msra.mxu0 0
        %868 = vmatprep.subr.bf16.mxu0 0
        %869 = vmatpush1.bf16.msra.mxu0 0
        %870 = vmatprep.subr.bf16.mxu0 0
        %871 = vmatpush1.bf16.msra.mxu0 0
        %872 = vmatprep.subr.bf16.mxu0 0
        %873 = vmatpush1.bf16.msra.mxu0 0
        %874 = vmatprep.subr.bf16.mxu0 0
        %875 = vmatpush1.bf16.msra.mxu0 0
        %876 = vmatprep.subr.bf16.mxu0 0
        %877 = vmatpush1.bf16.msra.mxu0 0
        %878 = vmatprep.subr.bf16.mxu0 0
        %879 = vmatpush1.bf16.msra.mxu0 0
        %880 = vmatprep.mubr.bf16.mxu0 0
        %881 = vmatmul.mubr.bf16.gmra.mrb[0].mxu0 %v846
        %v882 = vpop.f32.mrb[0].mxu0
        %v883 = vadd.f32 %v831, %v882
        %v884 = vpop.f32.mrb[0].mxu0
        %v885 = vpop.f32.mrb[0].mxu0
        %v886 = vpop.f32.mrb[0].mxu0
        %887 = vdwg.mxu0
        %v888 = vpack.c.bf16 %v883, %v883
        %890 = vrot.lane.b32.xlu0 %v888, 96
        %v891 = vpop.permute.xlu0 %890
        %vm892 = vcmask 64512
        %v894 = vsel %vm892, %v888, 0
        %v897 = vsel %vm892, %v891, 0
        %899 = vmatprep.subr.bf16.mxu0 0
        %900 = vmatpush1.bf16.xpose.msra.mxu0 %v897
        %901 = vmatprep.subr.bf16.mxu0 0
        %902 = vmatpush1.bf16.xpose.msra.mxu0 0
        %903 = vmatprep.subr.bf16.mxu0 0
        %904 = vmatpush1.bf16.xpose.msra.mxu0 0
        %905 = vmatprep.subr.bf16.mxu0 0
        %906 = vmatpush1.bf16.xpose.msra.mxu0 0
        %907 = vmatprep.subr.bf16.mxu0 0
        %908 = vmatpush1.bf16.xpose.msra.mxu0 0
        %909 = vmatprep.subr.bf16.mxu0 0
        %910 = vmatpush1.bf16.xpose.msra.mxu0 0
        %911 = vmatprep.subr.bf16.mxu0 0
        %912 = vmatpush1.bf16.xpose.msra.mxu0 0
        %913 = vmatprep.subr.bf16.mxu0 0
        %914 = vmatpush1.bf16.xpose.msra.mxu0 0
        %915 = vmatprep.subr.bf16.mxu0 0
        %916 = vmatpush1.bf16.xpose.msra.mxu0 0
        %917 = vmatprep.subr.bf16.mxu0 0
        %918 = vmatpush1.bf16.xpose.msra.mxu0 0
        %919 = vmatprep.subr.bf16.mxu0 0
        %920 = vmatpush1.bf16.xpose.msra.mxu0 0
        %921 = vmatprep.subr.bf16.mxu0 0
        %922 = vmatpush1.bf16.xpose.msra.mxu0 0
        %923 = vmatprep.subr.bf16.mxu0 0
        %924 = vmatpush1.bf16.xpose.msra.mxu0 0
        %925 = vmatprep.subr.bf16.mxu0 0
        %926 = vmatpush1.bf16.xpose.msra.mxu0 0
        %927 = vmatprep.subr.bf16.mxu0 0
        %928 = vmatpush1.bf16.xpose.msra.mxu0 0
        %929 = vmatprep.subr.bf16.mxu0 0
        %930 = vmatpush1.bf16.xpose.msra.mxu0 0
        %931 = vmatprep.mubr.bf16.mxu0 0
        %932 = vmatmul.mubr.bf16.gmra.mrb[0].mxu0 %v894
        %v933 = vpop.f32.mrb[0].mxu0
        %v934 = vadd.f32 0.0, %v933
        %v935 = vpop.f32.mrb[0].mxu0
        %v936 = vpop.f32.mrb[0].mxu0
        %v937 = vpop.f32.mrb[0].mxu0
        %938 = vdwg.mxu0
        %v939 = vmul.f32 %v934, 0.35355338
        %v940 = vld [vmem:[%s3] sm:$0xff]
        %v941 = vadd.f32 %v939, %v940
        %v942 = vsel %vm892, %v941, -inf
        %943 = vmax.xlane.f32.xlu0 %v942
        %v944 = vpop.xlane.xlu0 %943
        %v945 = vsub.f32 %v941, %v944
        %v946 = vmul.f32 %v945, 1.442695
        %v947 = vpow.pop %v946
        %v948 = vsel %vm892, %v947, 0.0
        %949 = vadd.xlane.f32.xlu0 %v948
        %v950 = vpop.xlane.xlu0 %949
        %v951 = vrcp.pop %v950
        %v952 = vmul.f32 %v947, %v951
        %v953 = vpack.c.bf16 %v952, %v952
        %954 = vrot.lane.b32.xlu0 %v888, 64
        %v955 = vpop.permute.xlu0 %954
        %v957 = vsel %vm892, %v953, 0
        %vm959 = vcmask 1043456
        %v961 = vsel %vm959, %v955, 0
        %963 = vmatprep.subr.bf16.mxu0 0
        %964 = vmatpush1.bf16.msra.mxu0 %v961
        %965 = vmatprep.subr.bf16.mxu0 0
        %966 = vmatpush1.bf16.msra.mxu0 0
        %967 = vmatprep.subr.bf16.mxu0 0
        %968 = vmatpush1.bf16.msra.mxu0 0
        %969 = vmatprep.subr.bf16.mxu0 0
        %970 = vmatpush1.bf16.msra.mxu0 0
        %971 = vmatprep.subr.bf16.mxu0 0
        %972 = vmatpush1.bf16.msra.mxu0 0
        %973 = vmatprep.subr.bf16.mxu0 0
        %974 = vmatpush1.bf16.msra.mxu0 0
        %975 = vmatprep.subr.bf16.mxu0 0
        %976 = vmatpush1.bf16.msra.mxu0 0
        %977 = vmatprep.subr.bf16.mxu0 0
        %978 = vmatpush1.bf16.msra.mxu0 0
        %979 = vmatprep.subr.bf16.mxu0 0
        %980 = vmatpush1.bf16.msra.mxu0 0
        %981 = vmatprep.subr.bf16.mxu0 0
        %982 = vmatpush1.bf16.msra.mxu0 0
        %983 = vmatprep.subr.bf16.mxu0 0
        %984 = vmatpush1.bf16.msra.mxu0 0
        %985 = vmatprep.subr.bf16.mxu0 0
        %986 = vmatpush1.bf16.msra.mxu0 0
        %987 = vmatprep.subr.bf16.mxu0 0
        %988 = vmatpush1.bf16.msra.mxu0 0
        %989 = vmatprep.subr.bf16.mxu0 0
        %990 = vmatpush1.bf16.msra.mxu0 0
        %991 = vmatprep.subr.bf16.mxu0 0
        %992 = vmatpush1.bf16.msra.mxu0 0
        %993 = vmatprep.subr.bf16.mxu0 0
        %994 = vmatpush1.bf16.msra.mxu0 0
        %995 = vmatprep.mubr.bf16.mxu0 0
        %996 = vmatmul.mubr.bf16.gmra.mrb[0].mxu0 %v957
        %v997 = vpop.f32.mrb[0].mxu0
        %v998 = vadd.f32 0.0, %v997
        %v999 = vpop.f32.mrb[0].mxu0
        %v1000 = vpop.f32.mrb[0].mxu0
        %v1001 = vpop.f32.mrb[0].mxu0
        %1002 = vdwg.mxu0
        %1003 = vrot.lane.b32.xlu0 %v888, 120
        %v1004 = vpop.permute.xlu0 %1003
        %1005 = vrot.lane.b32.xlu0 %v888, 88
        %v1006 = vpop.permute.xlu0 %1005
        %v1008 = vsel %vm892, %v1004, 0
        %v1011 = vsel %vm892, %v1006, 0
        %1013 = vmatprep.subr.bf16.mxu0 0
        %1014 = vmatpush1.bf16.xpose.msra.mxu0 %v1011
        %1015 = vmatprep.subr.bf16.mxu0 0
        %1016 = vmatpush1.bf16.xpose.msra.mxu0 0
        %1017 = vmatprep.subr.bf16.mxu0 0
        %1018 = vmatpush1.bf16.xpose.msra.mxu0 0
        %1019 = vmatprep.subr.bf16.mxu0 0
        %1020 = vmatpush1.bf16.xpose.msra.mxu0 0
        %1021 = vmatprep.subr.bf16.mxu0 0
        %1022 = vmatpush1.bf16.xpose.msra.mxu0 0
        %1023 = vmatprep.subr.bf16.mxu0 0
        %1024 = vmatpush1.bf16.xpose.msra.mxu0 0
        %1025 = vmatprep.subr.bf16.mxu0 0
        %1026 = vmatpush1.bf16.xpose.msra.mxu0 0
        %1027 = vmatprep.subr.bf16.mxu0 0
        %1028 = vmatpush1.bf16.xpose.msra.mxu0 0
        %1029 = vmatprep.subr.bf16.mxu0 0
        %1030 = vmatpush1.bf16.xpose.msra.mxu0 0
        %1031 = vmatprep.subr.bf16.mxu0 0
        %1032 = vmatpush1.bf16.xpose.msra.mxu0 0
        %1033 = vmatprep.subr.bf16.mxu0 0
        %1034 = vmatpush1.bf16.xpose.msra.mxu0 0
        %1035 = vmatprep.subr.bf16.mxu0 0
        %1036 = vmatpush1.bf16.xpose.msra.mxu0 0
        %1037 = vmatprep.subr.bf16.mxu0 0
        %1038 = vmatpush1.bf16.xpose.msra.mxu0 0
        %1039 = vmatprep.subr.bf16.mxu0 0
        %1040 = vmatpush1.bf16.xpose.msra.mxu0 0
        %1041 = vmatprep.subr.bf16.mxu0 0
        %1042 = vmatpush1.bf16.xpose.msra.mxu0 0
        %1043 = vmatprep.subr.bf16.mxu0 0
        %1044 = vmatpush1.bf16.xpose.msra.mxu0 0
        %1045 = vmatprep.mubr.bf16.mxu0 0
        %1046 = vmatmul.mubr.bf16.gmra.mrb[0].mxu0 %v1008
        %v1047 = vpop.f32.mrb[0].mxu0
        %v1048 = vadd.f32 0.0, %v1047
        %v1049 = vpop.f32.mrb[0].mxu0
        %v1050 = vpop.f32.mrb[0].mxu0
        %v1051 = vpop.f32.mrb[0].mxu0
        %1052 = vdwg.mxu0
        %v1053 = vmul.f32 %v1048, 0.35355338
        %v1054 = vadd.f32 %v1053, %v940
        %v1055 = vsel %vm892, %v1054, -inf
        %1056 = vmax.xlane.f32.xlu0 %v1055
        %v1057 = vpop.xlane.xlu0 %1056
        %v1058 = vsub.f32 %v1054, %v1057
        %v1059 = vmul.f32 %v1058, 1.442695
        %v1060 = vpow.pop %v1059
        %v1061 = vsel %vm892, %v1060, 0.0
        %1062 = vadd.xlane.f32.xlu0 %v1061
        %v1063 = vpop.xlane.xlu0 %1062
        %v1064 = vrcp.pop %v1063
        %v1065 = vmul.f32 %v1060, %v1064
        %v1066 = vpack.c.bf16 %v1065, %v1065
        %1067 = vrot.lane.b32.xlu0 %v888, 56
        %v1068 = vpop.permute.xlu0 %1067
        %v1070 = vsel %vm892, %v1066, 0
        %v1073 = vsel %vm959, %v1068, 0
        %1075 = vmatprep.subr.bf16.mxu0 0
        %1076 = vmatpush1.bf16.msra.mxu0 %v1073
        %1077 = vmatprep.subr.bf16.mxu0 0
        %1078 = vmatpush1.bf16.msra.mxu0 0
        %1079 = vmatprep.subr.bf16.mxu0 0
        %1080 = vmatpush1.bf16.msra.mxu0 0
        %1081 = vmatprep.subr.bf16.mxu0 0
        %1082 = vmatpush1.bf16.msra.mxu0 0
        %1083 = vmatprep.subr.bf16.mxu0 0
        %1084 = vmatpush1.bf16.msra.mxu0 0
        %1085 = vmatprep.subr.bf16.mxu0 0
        %1086 = vmatpush1.bf16.msra.mxu0 0
        %1087 = vmatprep.subr.bf16.mxu0 0
        %1088 = vmatpush1.bf16.msra.mxu0 0
        %1089 = vmatprep.subr.bf16.mxu0 0
        %1090 = vmatpush1.bf16.msra.mxu0 0
        %1091 = vmatprep.subr.bf16.mxu0 0
        %1092 = vmatpush1.bf16.msra.mxu0 0
        %1093 = vmatprep.subr.bf16.mxu0 0
        %1094 = vmatpush1.bf16.msra.mxu0 0
        %1095 = vmatprep.subr.bf16.mxu0 0
        %1096 = vmatpush1.bf16.msra.mxu0 0
        %1097 = vmatprep.subr.bf16.mxu0 0
        %1098 = vmatpush1.bf16.msra.mxu0 0
        %1099 = vmatprep.subr.bf16.mxu0 0
        %1100 = vmatpush1.bf16.msra.mxu0 0
        %1101 = vmatprep.subr.bf16.mxu0 0
        %1102 = vmatpush1.bf16.msra.mxu0 0
        %1103 = vmatprep.subr.bf16.mxu0 0
        %1104 = vmatpush1.bf16.msra.mxu0 0
        %1105 = vmatprep.subr.bf16.mxu0 0
        %1106 = vmatpush1.bf16.msra.mxu0 0
        %1107 = vmatprep.mubr.bf16.mxu0 0
        %1108 = vmatmul.mubr.bf16.gmra.mrb[0].mxu0 %v1070
        %v1109 = vpop.f32.mrb[0].mxu0
        %v1110 = vadd.f32 0.0, %v1109
        %v1111 = vpop.f32.mrb[0].mxu0
        %v1112 = vpop.f32.mrb[0].mxu0
        %v1113 = vpop.f32.mrb[0].mxu0
        %1114 = vdwg.mxu0
        %1115 = vrot.lane.b32.xlu0 %v888, 112
        %v1116 = vpop.permute.xlu0 %1115
        %1117 = vrot.lane.b32.xlu0 %v888, 80
        %v1118 = vpop.permute.xlu0 %1117
        %v1120 = vsel %vm892, %v1116, 0
        %v1123 = vsel %vm892, %v1118, 0
        %1125 = vmatprep.subr.bf16.mxu0 0
        %1126 = vmatpush1.bf16.xpose.msra.mxu0 %v1123
        %1127 = vmatprep.subr.bf16.mxu0 0
        %1128 = vmatpush1.bf16.xpose.msra.mxu0 0
        %1129 = vmatprep.subr.bf16.mxu0 0
        %1130 = vmatpush1.bf16.xpose.msra.mxu0 0
        %1131 = vmatprep.subr.bf16.mxu0 0
        %1132 = vmatpush1.bf16.xpose.msra.mxu0 0
        %1133 = vmatprep.subr.bf16.mxu0 0
        %1134 = vmatpush1.bf16.xpose.msra.mxu0 0
        %1135 = vmatprep.subr.bf16.mxu0 0
        %1136 = vmatpush1.bf16.xpose.msra.mxu0 0
        %1137 = vmatprep.subr.bf16.mxu0 0
        %1138 = vmatpush1.bf16.xpose.msra.mxu0 0
        %1139 = vmatprep.subr.bf16.mxu0 0
        %1140 = vmatpush1.bf16.xpose.msra.mxu0 0
        %1141 = vmatprep.subr.bf16.mxu0 0
        %1142 = vmatpush1.bf16.xpose.msra.mxu0 0
        %1143 = vmatprep.subr.bf16.mxu0 0
        %1144 = vmatpush1.bf16.xpose.msra.mxu0 0
        %1145 = vmatprep.subr.bf16.mxu0 0
        %1146 = vmatpush1.bf16.xpose.msra.mxu0 0
        %1147 = vmatprep.subr.bf16.mxu0 0
        %1148 = vmatpush1.bf16.xpose.msra.mxu0 0
        %1149 = vmatprep.subr.bf16.mxu0 0
        %1150 = vmatpush1.bf16.xpose.msra.mxu0 0
        %1151 = vmatprep.subr.bf16.mxu0 0
        %1152 = vmatpush1.bf16.xpose.msra.mxu0 0
        %1153 = vmatprep.subr.bf16.mxu0 0
        %1154 = vmatpush1.bf16.xpose.msra.mxu0 0
        %1155 = vmatprep.subr.bf16.mxu0 0
        %1156 = vmatpush1.bf16.xpose.msra.mxu0 0
        %1157 = vmatprep.mubr.bf16.mxu0 0
        %1158 = vmatmul.mubr.bf16.gmra.mrb[0].mxu0 %v1120
        %v1159 = vpop.f32.mrb[0].mxu0
        %v1160 = vadd.f32 0.0, %v1159
        %v1161 = vpop.f32.mrb[0].mxu0
        %v1162 = vpop.f32.mrb[0].mxu0
        %v1163 = vpop.f32.mrb[0].mxu0
        %1164 = vdwg.mxu0
        %v1165 = vmul.f32 %v1160, 0.35355338
        %v1166 = vadd.f32 %v1165, %v940
        %v1167 = vsel %vm892, %v1166, -inf
        %1168 = vmax.xlane.f32.xlu0 %v1167
        %v1169 = vpop.xlane.xlu0 %1168
        %v1170 = vsub.f32 %v1166, %v1169
        %v1171 = vmul.f32 %v1170, 1.442695
        %v1172 = vpow.pop %v1171
        %v1173 = vsel %vm892, %v1172, 0.0
        %1174 = vadd.xlane.f32.xlu0 %v1173
        %v1175 = vpop.xlane.xlu0 %1174
        %v1176 = vrcp.pop %v1175
        %v1177 = vmul.f32 %v1172, %v1176
        %v1178 = vpack.c.bf16 %v1177, %v1177
        %1179 = vrot.lane.b32.xlu0 %v888, 48
        %v1180 = vpop.permute.xlu0 %1179
        %v1182 = vsel %vm892, %v1178, 0
        %v1185 = vsel %vm959, %v1180, 0
        %1187 = vmatprep.subr.bf16.mxu0 0
        %1188 = vmatpush1.bf16.msra.mxu0 %v1185
        %1189 = vmatprep.subr.bf16.mxu0 0
        %1190 = vmatpush1.bf16.msra.mxu0 0
        %1191 = vmatprep.subr.bf16.mxu0 0
        %1192 = vmatpush1.bf16.msra.mxu0 0
        %1193 = vmatprep.subr.bf16.mxu0 0
        %1194 = vmatpush1.bf16.msra.mxu0 0
        %1195 = vmatprep.subr.bf16.mxu0 0
        %1196 = vmatpush1.bf16.msra.mxu0 0
        %1197 = vmatprep.subr.bf16.mxu0 0
        %1198 = vmatpush1.bf16.msra.mxu0 0
        %1199 = vmatprep.subr.bf16.mxu0 0
        %1200 = vmatpush1.bf16.msra.mxu0 0
        %1201 = vmatprep.subr.bf16.mxu0 0
        %1202 = vmatpush1.bf16.msra.mxu0 0
        %1203 = vmatprep.subr.bf16.mxu0 0
        %1204 = vmatpush1.bf16.msra.mxu0 0
        %1205 = vmatprep.subr.bf16.mxu0 0
        %1206 = vmatpush1.bf16.msra.mxu0 0
        %1207 = vmatprep.subr.bf16.mxu0 0
        %1208 = vmatpush1.bf16.msra.mxu0 0
        %1209 = vmatprep.subr.bf16.mxu0 0
        %1210 = vmatpush1.bf16.msra.mxu0 0
        %1211 = vmatprep.subr.bf16.mxu0 0
        %1212 = vmatpush1.bf16.msra.mxu0 0
        %1213 = vmatprep.subr.bf16.mxu0 0
        %1214 = vmatpush1.bf16.msra.mxu0 0
        %1215 = vmatprep.subr.bf16.mxu0 0
        %1216 = vmatpush1.bf16.msra.mxu0 0
        %1217 = vmatprep.subr.bf16.mxu0 0
        %1218 = vmatpush1.bf16.msra.mxu0 0
        %1219 = vmatprep.mubr.bf16.mxu0 0
        %1220 = vmatmul.mubr.bf16.gmra.mrb[0].mxu0 %v1182
        %v1221 = vpop.f32.mrb[0].mxu0
        %v1222 = vadd.f32 0.0, %v1221
        %v1223 = vpop.f32.mrb[0].mxu0
        %v1224 = vpop.f32.mrb[0].mxu0
        %v1225 = vpop.f32.mrb[0].mxu0
        %1226 = vdwg.mxu0
        %1227 = vrot.lane.b32.xlu0 %v888, 104
        %v1228 = vpop.permute.xlu0 %1227
        %1229 = vrot.lane.b32.xlu0 %v888, 72
        %v1230 = vpop.permute.xlu0 %1229
        %v1232 = vsel %vm892, %v1228, 0
        %v1235 = vsel %vm892, %v1230, 0
        %1237 = vmatprep.subr.bf16.mxu0 0
        %1238 = vmatpush1.bf16.xpose.msra.mxu0 %v1235
        %1239 = vmatprep.subr.bf16.mxu0 0
        %1240 = vmatpush1.bf16.xpose.msra.mxu0 0
        %1241 = vmatprep.subr.bf16.mxu0 0
        %1242 = vmatpush1.bf16.xpose.msra.mxu0 0
        %1243 = vmatprep.subr.bf16.mxu0 0
        %1244 = vmatpush1.bf16.xpose.msra.mxu0 0
        %1245 = vmatprep.subr.bf16.mxu0 0
        %1246 = vmatpush1.bf16.xpose.msra.mxu0 0
        %1247 = vmatprep.subr.bf16.mxu0 0
        %1248 = vmatpush1.bf16.xpose.msra.mxu0 0
        %1249 = vmatprep.subr.bf16.mxu0 0
        %1250 = vmatpush1.bf16.xpose.msra.mxu0 0
        %1251 = vmatprep.subr.bf16.mxu0 0
        %1252 = vmatpush1.bf16.xpose.msra.mxu0 0
        %1253 = vmatprep.subr.bf16.mxu0 0
        %1254 = vmatpush1.bf16.xpose.msra.mxu0 0
        %1255 = vmatprep.subr.bf16.mxu0 0
        %1256 = vmatpush1.bf16.xpose.msra.mxu0 0
        %1257 = vmatprep.subr.bf16.mxu0 0
        %1258 = vmatpush1.bf16.xpose.msra.mxu0 0
        %1259 = vmatprep.subr.bf16.mxu0 0
        %1260 = vmatpush1.bf16.xpose.msra.mxu0 0
        %1261 = vmatprep.subr.bf16.mxu0 0
        %1262 = vmatpush1.bf16.xpose.msra.mxu0 0
        %1263 = vmatprep.subr.bf16.mxu0 0
        %1264 = vmatpush1.bf16.xpose.msra.mxu0 0
        %1265 = vmatprep.subr.bf16.mxu0 0
        %1266 = vmatpush1.bf16.xpose.msra.mxu0 0
        %1267 = vmatprep.subr.bf16.mxu0 0
        %1268 = vmatpush1.bf16.xpose.msra.mxu0 0
        %1269 = vmatprep.mubr.bf16.mxu0 0
        %1270 = vmatmul.mubr.bf16.gmra.mrb[0].mxu0 %v1232
        %v1271 = vpop.f32.mrb[0].mxu0
        %v1272 = vadd.f32 0.0, %v1271
        %v1273 = vpop.f32.mrb[0].mxu0
        %v1274 = vpop.f32.mrb[0].mxu0
        %v1275 = vpop.f32.mrb[0].mxu0
        %1276 = vdwg.mxu0
        %v1277 = vmul.f32 %v1272, 0.35355338
        %v1278 = vadd.f32 %v1277, %v940
        %v1279 = vsel %vm892, %v1278, -inf
        %1280 = vmax.xlane.f32.xlu0 %v1279
        %v1281 = vpop.xlane.xlu0 %1280
        %v1282 = vsub.f32 %v1278, %v1281
        %v1283 = vmul.f32 %v1282, 1.442695
        %v1284 = vpow.pop %v1283
        %v1285 = vsel %vm892, %v1284, 0.0
        %1286 = vadd.xlane.f32.xlu0 %v1285
        %v1287 = vpop.xlane.xlu0 %1286
        %v1288 = vrcp.pop %v1287
        %v1289 = vmul.f32 %v1284, %v1288
        %v1290 = vpack.c.bf16 %v1289, %v1289
        %1291 = vrot.lane.b32.xlu0 %v888, 40
        %v1292 = vpop.permute.xlu0 %1291
        %v1294 = vsel %vm892, %v1290, 0
        %v1297 = vsel %vm959, %v1292, 0
        %1299 = vmatprep.subr.bf16.mxu0 0
        %1300 = vmatpush1.bf16.msra.mxu0 %v1297
        %1301 = vmatprep.subr.bf16.mxu0 0
        %1302 = vmatpush1.bf16.msra.mxu0 0
        %1303 = vmatprep.subr.bf16.mxu0 0
        %1304 = vmatpush1.bf16.msra.mxu0 0
        %1305 = vmatprep.subr.bf16.mxu0 0
        %1306 = vmatpush1.bf16.msra.mxu0 0
        %1307 = vmatprep.subr.bf16.mxu0 0
        %1308 = vmatpush1.bf16.msra.mxu0 0
        %1309 = vmatprep.subr.bf16.mxu0 0
        %1310 = vmatpush1.bf16.msra.mxu0 0
        %1311 = vmatprep.subr.bf16.mxu0 0
        %1312 = vmatpush1.bf16.msra.mxu0 0
        %1313 = vmatprep.subr.bf16.mxu0 0
        %1314 = vmatpush1.bf16.msra.mxu0 0
        %1315 = vmatprep.subr.bf16.mxu0 0
        %1316 = vmatpush1.bf16.msra.mxu0 0
        %1317 = vmatprep.subr.bf16.mxu0 0
        %1318 = vmatpush1.bf16.msra.mxu0 0
        %1319 = vmatprep.subr.bf16.mxu0 0
        %1320 = vmatpush1.bf16.msra.mxu0 0
        %1321 = vmatprep.subr.bf16.mxu0 0
        %1322 = vmatpush1.bf16.msra.mxu0 0
        %1323 = vmatprep.subr.bf16.mxu0 0
        %1324 = vmatpush1.bf16.msra.mxu0 0
        %1325 = vmatprep.subr.bf16.mxu0 0
        %1326 = vmatpush1.bf16.msra.mxu0 0
        %1327 = vmatprep.subr.bf16.mxu0 0
        %1328 = vmatpush1.bf16.msra.mxu0 0
        %1329 = vmatprep.subr.bf16.mxu0 0
        %1330 = vmatpush1.bf16.msra.mxu0 0
        %1331 = vmatprep.mubr.bf16.mxu0 0
        %1332 = vmatmul.mubr.bf16.gmra.mrb[0].mxu0 %v1294
        %v1333 = vpop.f32.mrb[0].mxu0
        %v1334 = vadd.f32 0.0, %v1333
        %v1335 = vpop.f32.mrb[0].mxu0
        %v1336 = vpop.f32.mrb[0].mxu0
        %v1337 = vpop.f32.mrb[0].mxu0
        %1338 = vdwg.mxu0
        %1340 = vrot.lane.b32.xlu0 %v1110, 8
        %v1341 = vpop.permute.xlu0 %1340
        %1344 = vrot.lane.b32.xlu0 %v1222, 16
        %v1345 = vpop.permute.xlu0 %1344
        %1348 = vrot.lane.b32.xlu0 %v1334, 24
        %v1349 = vpop.permute.xlu0 %1348
        %v1351 = vsel %vm892, %v998, %v1341
        %vm1352 = vcmask 130048
        %v1353 = vsel %vm1352, %v1351, %v1345
        %vm1354 = vcmask 195584
        %v1355 = vsel %vm1354, %v1353, %v1349
        %v1356 = vpack.c.bf16 %v1355, %v1355
        %v1357 = vld [vmem:[%s753] sm:$0xf]
        %v1358 = vld [vmem:[%s753 + $0x4] sm:$0xf]
        %v1359 = vld [vmem:[%s753 + $0x8] sm:$0xf]
        %v1360 = vld [vmem:[%s753 + $0xc] sm:$0xf]
        %v1361 = vld [vmem:[%s756] sm:$0x1]
        %v1363 = vlaneseq
        %v1364 = vshrl.u32 %v1363, 7
        %v1365 = vsub.s32 0, %v1364
        %v1366 = vrot.slane %v1361, %v1365
        %v1372 = vunpack.c.l.b16 %v1357
        %v1373 = vunpack.c.l.b16 %v1358
        %v1374 = vunpack.c.l.b16 %v1359
        %v1375 = vunpack.c.l.b16 %v1360
        %v1376 = vpack.c.b16 %v1373, %v1372
        %v1377 = vpack.c.b16 %v1375, %v1374
        %v1381 = vsel %vm792, %v1356, 0
        %1383 = vmatprep.subr.bf16.mxu0 0
        %1384 = vmatpush1.bf16.msra.mxu0 %v1376
        %1385 = vmatprep.subr.bf16.mxu0 0
        %1386 = vmatpush1.bf16.msra.mxu0 %v1377
        %1387 = vmatprep.subr.bf16.mxu0 0
        %1388 = vmatpush1.bf16.msra.mxu0 0
        %1389 = vmatprep.subr.bf16.mxu0 0
        %1390 = vmatpush1.bf16.msra.mxu0 0
        %1391 = vmatprep.subr.bf16.mxu0 0
        %1392 = vmatpush1.bf16.msra.mxu0 0
        %1393 = vmatprep.subr.bf16.mxu0 0
        %1394 = vmatpush1.bf16.msra.mxu0 0
        %1395 = vmatprep.subr.bf16.mxu0 0
        %1396 = vmatpush1.bf16.msra.mxu0 0
        %1397 = vmatprep.subr.bf16.mxu0 0
        %1398 = vmatpush1.bf16.msra.mxu0 0
        %1399 = vmatprep.subr.bf16.mxu0 0
        %1400 = vmatpush1.bf16.msra.mxu0 0
        %1401 = vmatprep.subr.bf16.mxu0 0
        %1402 = vmatpush1.bf16.msra.mxu0 0
        %1403 = vmatprep.subr.bf16.mxu0 0
        %1404 = vmatpush1.bf16.msra.mxu0 0
        %1405 = vmatprep.subr.bf16.mxu0 0
        %1406 = vmatpush1.bf16.msra.mxu0 0
        %1407 = vmatprep.subr.bf16.mxu0 0
        %1408 = vmatpush1.bf16.msra.mxu0 0
        %1409 = vmatprep.subr.bf16.mxu0 0
        %1410 = vmatpush1.bf16.msra.mxu0 0
        %1411 = vmatprep.subr.bf16.mxu0 0
        %1412 = vmatpush1.bf16.msra.mxu0 0
        %1413 = vmatprep.subr.bf16.mxu0 0
        %1414 = vmatpush1.bf16.msra.mxu0 0
        %1415 = vmatprep.mubr.bf16.mxu0 0
        %1416 = vmatmul.mubr.bf16.gmra.mrb[0].mxu0 %v1381
        %v1417 = vpop.f32.mrb[0].mxu0
        %v1418 = vadd.f32 %v1366, %v1417
        %v1419 = vpop.f32.mrb[0].mxu0
        %v1420 = vpop.f32.mrb[0].mxu0
        %v1421 = vpop.f32.mrb[0].mxu0
        %1422 = vdwg.mxu0
        %v1423 = vadd.f32 %v789, %v1418
        %v1424 = vld [vmem:[%s759] sm:$0x1]
        %v1425 = vld [vmem:[%s762] sm:$0x1]
        %v1426 = vsel %vm792, %v1423, 0.0
        %1427 = vadd.xlane.f32.xlu0 %v1426
        %v1428 = vpop.xlane.xlu0 %1427
        %v1429 = vmul.f32 %v1428, %v796
        %v1430 = vsub.f32 %v1423, %v1429
        %v1431 = vmul.f32 %v1430, %v1430
        %v1432 = vsel %vm792, %v1431, 0.0
        %1433 = vadd.xlane.f32.xlu0 %v1432
        %v1434 = vpop.xlane.xlu0 %1433
        %v1435 = vmul.f32 %v1434, %v796
        %v1436 = vadd.f32 %v1435, 1e-05
        %v1437 = vrsqrt.pop %v1436
        %v1438 = vmul.f32 %v1430, %v1437
        %v1440 = vlaneseq
        %v1441 = vshrl.u32 %v1440, 7
        %v1442 = vsub.s32 0, %v1441
        %v1443 = vrot.slane %v1424, %v1442
        %v1445 = vmul.f32 %v1438, %v1443
        %v1447 = vlaneseq
        %v1448 = vshrl.u32 %v1447, 7
        %v1449 = vsub.s32 0, %v1448
        %v1450 = vrot.slane %v1425, %v1449
        %v1452 = vadd.f32 %v1445, %v1450
        %v1453 = vpack.c.bf16 %v1452, %v1452
        %v1454 = vld [vmem:[%s767] sm:$0xf]
        %v1455 = vld [vmem:[%s767 + $0x4] sm:$0xf]
        %v1456 = vld [vmem:[%s767 + $0x8] sm:$0xf]
        %v1457 = vld [vmem:[%s767 + $0xc] sm:$0xf]
        %v1458 = vld [vmem:[%s770] sm:$0x1]
        %v1460 = vlaneseq
        %v1461 = vshrl.u32 %v1460, 7
        %v1462 = vsub.s32 0, %v1461
        %v1463 = vrot.slane %v1458, %v1462
        %v1469 = vunpack.c.l.b16 %v1454
        %v1470 = vunpack.c.l.b16 %v1455
        %v1471 = vunpack.c.l.b16 %v1456
        %v1472 = vunpack.c.l.b16 %v1457
        %v1473 = vpack.c.b16 %v1470, %v1469
        %v1474 = vpack.c.b16 %v1472, %v1471
        %v1478 = vsel %vm792, %v1453, 0
        %1480 = vmatprep.subr.bf16.mxu0 0
        %1481 = vmatpush1.bf16.msra.mxu0 %v1473
        %1482 = vmatprep.subr.bf16.mxu0 0
        %1483 = vmatpush1.bf16.msra.mxu0 %v1474
        %1484 = vmatprep.subr.bf16.mxu0 0
        %1485 = vmatpush1.bf16.msra.mxu0 0
        %1486 = vmatprep.subr.bf16.mxu0 0
        %1487 = vmatpush1.bf16.msra.mxu0 0
        %1488 = vmatprep.subr.bf16.mxu0 0
        %1489 = vmatpush1.bf16.msra.mxu0 0
        %1490 = vmatprep.subr.bf16.mxu0 0
        %1491 = vmatpush1.bf16.msra.mxu0 0
        %1492 = vmatprep.subr.bf16.mxu0 0
        %1493 = vmatpush1.bf16.msra.mxu0 0
        %1494 = vmatprep.subr.bf16.mxu0 0
        %1495 = vmatpush1.bf16.msra.mxu0 0
        %1496 = vmatprep.subr.bf16.mxu0 0
        %1497 = vmatpush1.bf16.msra.mxu0 0
        %1498 = vmatprep.subr.bf16.mxu0 0
        %1499 = vmatpush1.bf16.msra.mxu0 0
        %1500 = vmatprep.subr.bf16.mxu0 0
        %1501 = vmatpush1.bf16.msra.mxu0 0
        %1502 = vmatprep.subr.bf16.mxu0 0
        %1503 = vmatpush1.bf16.msra.mxu0 0
        %1504 = vmatprep.subr.bf16.mxu0 0
        %1505 = vmatpush1.bf16.msra.mxu0 0
        %1506 = vmatprep.subr.bf16.mxu0 0
        %1507 = vmatpush1.bf16.msra.mxu0 0
        %1508 = vmatprep.subr.bf16.mxu0 0
        %1509 = vmatpush1.bf16.msra.mxu0 0
        %1510 = vmatprep.subr.bf16.mxu0 0
        %1511 = vmatpush1.bf16.msra.mxu0 0
        %1512 = vmatprep.mubr.bf16.mxu0 0
        %1513 = vmatmul.mubr.bf16.gmra.mrb[0].mxu0 %v1478
        %v1514 = vpop.f32.mrb[0].mxu0
        %v1515 = vadd.f32 %v1463, %v1514
        %v1516 = vpop.f32.mrb[0].mxu0
        %v1517 = vpop.f32.mrb[0].mxu0
        %v1518 = vpop.f32.mrb[0].mxu0
        %1519 = vdwg.mxu0
        %v1520 = vmul.f32 %v1515, -1.702
        %v1521 = vmul.f32 %v1520, 1.442695
        %v1522 = vpow.pop %v1521
        %v1523 = vadd.f32 %v1522, 1.0
        %v1524 = vrcp.pop %v1523
        %v1525 = vmul.f32 1.0, %v1524
        %v1526 = vmul.f32 %v1515, %v1525
        %v1527 = vpack.c.bf16 %v1526, %v1526
        %v1528 = vld [vmem:[%s775] sm:$0xf]
        %v1529 = vld [vmem:[%s775 + $0x4] sm:$0xf]
        %v1530 = vld [vmem:[%s775 + $0x8] sm:$0xf]
        %v1531 = vld [vmem:[%s775 + $0xc] sm:$0xf]
        %v1532 = vld [vmem:[%s775 + $0x10] sm:$0xf]
        %v1533 = vld [vmem:[%s775 + $0x14] sm:$0xf]
        %v1534 = vld [vmem:[%s775 + $0x18] sm:$0xf]
        %v1535 = vld [vmem:[%s775 + $0x1c] sm:$0xf]
        %v1536 = vld [vmem:[%s775 + $0x20] sm:$0xf]
        %v1537 = vld [vmem:[%s775 + $0x24] sm:$0xf]
        %v1538 = vld [vmem:[%s775 + $0x28] sm:$0xf]
        %v1539 = vld [vmem:[%s775 + $0x2c] sm:$0xf]
        %v1540 = vld [vmem:[%s775 + $0x30] sm:$0xf]
        %v1541 = vld [vmem:[%s775 + $0x34] sm:$0xf]
        %v1542 = vld [vmem:[%s775 + $0x38] sm:$0xf]
        %v1543 = vld [vmem:[%s775 + $0x3c] sm:$0xf]
        %v1544 = vld [vmem:[%s778] sm:$0x1]
        %v1546 = vlaneseq
        %v1547 = vshrl.u32 %v1546, 7
        %v1548 = vsub.s32 0, %v1547
        %v1549 = vrot.slane %v1544, %v1548
        %v1567 = vunpack.c.l.b16 %v1528
        %v1568 = vunpack.c.l.b16 %v1529
        %v1569 = vunpack.c.l.b16 %v1530
        %v1570 = vunpack.c.l.b16 %v1531
        %v1571 = vunpack.c.l.b16 %v1532
        %v1572 = vunpack.c.l.b16 %v1533
        %v1573 = vunpack.c.l.b16 %v1534
        %v1574 = vunpack.c.l.b16 %v1535
        %v1575 = vunpack.c.l.b16 %v1536
        %v1576 = vunpack.c.l.b16 %v1537
        %v1577 = vunpack.c.l.b16 %v1538
        %v1578 = vunpack.c.l.b16 %v1539
        %v1579 = vunpack.c.l.b16 %v1540
        %v1580 = vunpack.c.l.b16 %v1541
        %v1581 = vunpack.c.l.b16 %v1542
        %v1582 = vunpack.c.l.b16 %v1543
        %v1583 = vpack.c.b16 %v1568, %v1567
        %v1584 = vpack.c.b16 %v1570, %v1569
        %v1585 = vpack.c.b16 %v1572, %v1571
        %v1586 = vpack.c.b16 %v1574, %v1573
        %v1587 = vpack.c.b16 %v1576, %v1575
        %v1588 = vpack.c.b16 %v1578, %v1577
        %v1589 = vpack.c.b16 %v1580, %v1579
        %v1590 = vpack.c.b16 %v1582, %v1581
        %1599 = vmatprep.subr.bf16.mxu0 0
        %1600 = vmatpush1.bf16.msra.mxu0 %v1583
        %1601 = vmatprep.subr.bf16.mxu0 0
        %1602 = vmatpush1.bf16.msra.mxu0 %v1584
        %1603 = vmatprep.subr.bf16.mxu0 0
        %1604 = vmatpush1.bf16.msra.mxu0 %v1585
        %1605 = vmatprep.subr.bf16.mxu0 0
        %1606 = vmatpush1.bf16.msra.mxu0 %v1586
        %1607 = vmatprep.subr.bf16.mxu0 0
        %1608 = vmatpush1.bf16.msra.mxu0 %v1587
        %1609 = vmatprep.subr.bf16.mxu0 0
        %1610 = vmatpush1.bf16.msra.mxu0 %v1588
        %1611 = vmatprep.subr.bf16.mxu0 0
        %1612 = vmatpush1.bf16.msra.mxu0 %v1589
        %1613 = vmatprep.subr.bf16.mxu0 0
        %1614 = vmatpush1.bf16.msra.mxu0 %v1590
        %1615 = vmatprep.subr.bf16.mxu0 0
        %1616 = vmatpush1.bf16.msra.mxu0 0
        %1617 = vmatprep.subr.bf16.mxu0 0
        %1618 = vmatpush1.bf16.msra.mxu0 0
        %1619 = vmatprep.subr.bf16.mxu0 0
        %1620 = vmatpush1.bf16.msra.mxu0 0
        %1621 = vmatprep.subr.bf16.mxu0 0
        %1622 = vmatpush1.bf16.msra.mxu0 0
        %1623 = vmatprep.subr.bf16.mxu0 0
        %1624 = vmatpush1.bf16.msra.mxu0 0
        %1625 = vmatprep.subr.bf16.mxu0 0
        %1626 = vmatpush1.bf16.msra.mxu0 0
        %1627 = vmatprep.subr.bf16.mxu0 0
        %1628 = vmatpush1.bf16.msra.mxu0 0
        %1629 = vmatprep.subr.bf16.mxu0 0
        %1630 = vmatpush1.bf16.msra.mxu0 0
        %1631 = vmatprep.mubr.bf16.mxu0 0
        %1632 = vmatmul.mubr.bf16.gmra.mrb[0].mxu0 %v1527
        %v1633 = vpop.f32.mrb[0].mxu0
        %v1634 = vadd.f32 %v1549, %v1633
        %v1635 = vpop.f32.mrb[0].mxu0
        %v1636 = vpop.f32.mrb[0].mxu0
        %v1637 = vpop.f32.mrb[0].mxu0
        %1638 = vdwg.mxu0
        %v1639 = vadd.f32 %v1423, %v1634
        %1640 = vst.msk [vmem:[#allocation2] sm:$0xff] %vm792, %v1639
        %p1641 = scmp.eq.s32.totalorder %s42, 1
        // Predicated region
        $region97: #{tpu_custom_call.1} parent=91 // pred_check
          %p1642 = pneg %p1641
        $region98: #{tpu_custom_call.1} parent=91 // pred_check_branch
          %1644 = sbr.rel (%p1642) target = $region100
        $region99: #{tpu_custom_call.1} parent=91 // pred_region
          %s1645 = sld [smem:[#allocation4 + %s41]]
          %v1646 = vlaneseq
          %v1647 = vshrl.u32 %v1646, 7
          %v1648 = vstv %s1645
          %vm1649 = vcmp.eq.s32.totalorder %v1647, %v1648
          %v1650 = vsel %vm1649, 1, 0
          %v1651 = vcvt.s32.f32 %v1650
          %v1652 = vmul.f32 %v1639, %v1651
          %v1653 = vsel %vm792, %v1652, 0.0
          %v1654 = vrot.slane %v1653, 4
          %v1655 = vadd.f32 %v1653, %v1654
          %v1656 = vrot.slane %v1655, 2
          %v1657 = vadd.f32 %v1655, %v1656
          %v1658 = vrot.slane %v1657, 1
          %v1659 = vadd.f32 %v1657, %v1658
          %v1660 = vld [vmem:[%s16] sm:$0x1]
          %v1661 = vld [vmem:[%s17] sm:$0x1]
          %v1662 = vsel %vm792, %v1659, 0.0
          %1663 = vadd.xlane.f32.xlu0 %v1662
          %v1664 = vpop.xlane.xlu0 %1663
          %v1665 = vmul.f32 %v1664, %v796
          %v1666 = vsub.f32 %v1659, %v1665
          %v1667 = vmul.f32 %v1666, %v1666
          %v1668 = vsel %vm792, %v1667, 0.0
          %1669 = vadd.xlane.f32.xlu0 %v1668
          %v1670 = vpop.xlane.xlu0 %1669
          %v1671 = vmul.f32 %v1670, %v796
          %v1672 = vadd.f32 %v1671, 1e-05
          %v1673 = vrsqrt.pop %v1672
          %v1674 = vmul.f32 %v1666, %v1673
          %v1675 = vmul.f32 %v1674, %v1660
          %v1676 = vadd.f32 %v1675, %v1661
          %v1677 = vpack.c.bf16 %v1676, %v1676
          %v1678 = vld [vmem:[%s18] sm:$0xf]
          %v1679 = vld [vmem:[%s18 + $0x4] sm:$0xf]
          %v1680 = vld [vmem:[%s18 + $0x8] sm:$0xf]
          %v1681 = vld [vmem:[%s18 + $0xc] sm:$0xf]
          %v1686 = vunpack.c.l.b16 %v1678
          %v1687 = vunpack.c.l.b16 %v1679
          %v1688 = vunpack.c.l.b16 %v1680
          %v1689 = vunpack.c.l.b16 %v1681
          %v1690 = vpack.c.b16 %v1687, %v1686
          %v1691 = vpack.c.b16 %v1689, %v1688
          %v1695 = vsel %vm792, %v1677, 0
          %1697 = vmatprep.subr.bf16.mxu0 0
          %1698 = vmatpush1.bf16.msra.mxu0 %v1690
          %1699 = vmatprep.subr.bf16.mxu0 0
          %1700 = vmatpush1.bf16.msra.mxu0 %v1691
          %1701 = vmatprep.subr.bf16.mxu0 0
          %1702 = vmatpush1.bf16.msra.mxu0 0
          %1703 = vmatprep.subr.bf16.mxu0 0
          %1704 = vmatpush1.bf16.msra.mxu0 0
          %1705 = vmatprep.subr.bf16.mxu0 0
          %1706 = vmatpush1.bf16.msra.mxu0 0
          %1707 = vmatprep.subr.bf16.mxu0 0
          %1708 = vmatpush1.bf16.msra.mxu0 0
          %1709 = vmatprep.subr.bf16.mxu0 0
          %1710 = vmatpush1.bf16.msra.mxu0 0
          %1711 = vmatprep.subr.bf16.mxu0 0
          %1712 = vmatpush1.bf16.msra.mxu0 0
          %1713 = vmatprep.subr.bf16.mxu0 0
          %1714 = vmatpush1.bf16.msra.mxu0 0
          %1715 = vmatprep.subr.bf16.mxu0 0
          %1716 = vmatpush1.bf16.msra.mxu0 0
          %1717 = vmatprep.subr.bf16.mxu0 0
          %1718 = vmatpush1.bf16.msra.mxu0 0
          %1719 = vmatprep.subr.bf16.mxu0 0
          %1720 = vmatpush1.bf16.msra.mxu0 0
          %1721 = vmatprep.subr.bf16.mxu0 0
          %1722 = vmatpush1.bf16.msra.mxu0 0
          %1723 = vmatprep.subr.bf16.mxu0 0
          %1724 = vmatpush1.bf16.msra.mxu0 0
          %1725 = vmatprep.subr.bf16.mxu0 0
          %1726 = vmatpush1.bf16.msra.mxu0 0
          %1727 = vmatprep.subr.bf16.mxu0 0
          %1728 = vmatpush1.bf16.msra.mxu0 0
          %1729 = vmatprep.mubr.bf16.mxu0 0
          %1730 = vmatmul.mubr.bf16.gmra.mrb[0].mxu0 %v1695
          %v1731 = vpop.f32.mrb[0].mxu0
          %v1732 = vadd.f32 0.0, %v1731
          %v1733 = vpop.f32.mrb[0].mxu0
          %v1734 = vpop.f32.mrb[0].mxu0
          %v1735 = vpop.f32.mrb[0].mxu0
          %1736 = vdwg.mxu0
          %vm1737 = vcmask 253952
          %1738 = vst.msk [vmem:[%s730] sm:$0x1] %vm1737, %v1732
        $region100: #{tpu_custom_call.1} parent=91 // pred_fallthru
          _
        %s1739 = sand.u32 %s500, 1
        %s1740 = scalar_lea.sflag [#allocation6], %s1739
        %s1741 = sand.u32 %s500, 1
        %s1742 = scalar_lea.vmem [#allocation5], %s1741
        // Predicated region
        $region101: #{tpu_custom_call.1} parent=91 // pred_check
          %p1743 = pneg %p510
        $region102: #{tpu_custom_call.1} parent=91 // pred_check_branch
          %1745 = sbr.rel (%p1743) target = $region104
        $region103: #{tpu_custom_call.1} parent=91 // pred_region
          %s1747 = ssub.s32 16, 16
          %1748 = vsyncadd %s1740, %s1747
          %s1749 = smul.addr %s41, 16
          %s1750 = scalar_lea.hbm %s19, %s1749
          %s1752 = sshll.u32 %s1742, 4
          %s1753 = int_to_ptr.vmem [resolvable:$true] %s1752
          %1755 = dma.vmem_to_hbm [thread:$0]  %s1753, 16, %s1750, %s1740
        $region104: #{tpu_custom_call.1} parent=91 // pred_fallthru
          _
      $region92: #{tpu_custom_call.1} parent=5 // pred_fallthru
        _
      %p1756 = scmp.le.s32.totalorder 2, %s32
      // Predicated region
      $region105: #{tpu_custom_call.1} parent=5 // pred_check
        %p1757 = pneg %p1756
      $region106: #{tpu_custom_call.1} parent=5 // pred_check_branch
        %1759 = sbr.rel (%p1757) target = $region108
      $region107: #{tpu_custom_call.1} parent=5 // pred_region
        %s1760 = ssub.s32 %s32, 2
        // Predicated region
        $region109: #{tpu_custom_call.1} parent=107 // pred_check
          %p1761 = pneg %p516
        $region110: #{tpu_custom_call.1} parent=107 // pred_check_branch
          %1763 = sbr.rel (%p1761) target = $region112
        $region111: #{tpu_custom_call.1} parent=107 // pred_region
          %s1764 = sand.u32 %s501, 1
          %s1765 = scalar_lea.sflag [#allocation6], %s1764
          %s1766 = sand.u32 %s501, 1
          %s1767 = scalar_lea.vmem [#allocation5], %s1766
          %1768 = dma.done %s1765, 16
        $region112: #{tpu_custom_call.1} parent=107 // pred_fallthru
          _
      $region108: #{tpu_custom_call.1} parent=5 // pred_fallthru
        _
    $region6: #{tpu_custom_call.1} parent=1 // loop_footer
      %s36 = sadd.s32 1, %s32
    $region7: #{tpu_custom_call.1} parent=1 // loop_footer_branch
      %31 = sbr.rel target = $region3
    $region8: #{tpu_custom_call.1} parent=1 // loop_exit
      _
    %1769 = vsyncpa [#allocation6], 1
    %s1770 = scalar_lea.sflag [#allocation6], 1
    %1771 = vsyncpa %s1770, 1

</llo_original>
